<compile_context>
chip_gen: v7x
topology: tpu7x:2x2x1
jax: 0.10.0
libtpu: 0.0.40
codegen_flags: <defaults>
</compile_context>

<pallas_src>
import jax
import jax.numpy as jnp
from jax.experimental import pallas as pl
from jax.experimental.pallas import tpu as pltpu

LOG_STD_MAX = 2.0
LOG_STD_MIN = -5.0

_C1 = 0.5 * (LOG_STD_MAX - LOG_STD_MIN)
_C0 = LOG_STD_MIN + _C1

HEAD = 128  # lane-dense padded width of each head (mean / log_std)


def _round_up(a, m):
    return ((a + m - 1) // m) * m


def actor_kernel(x_ref,
                 w1_ref, b1_ref, w2_ref, b2_ref, w3_ref, b3_ref, w4_ref, b4_ref,
                 wh_ref, bh_ref,
                 out_ref):
    f32 = jnp.float32
    wdt = w1_ref.dtype  # bf16 (default) or f32; accumulation is always f32.

    # Activations are cast to the weight dtype before each matmul so the MXU
    # runs at native bf16 rate; bias add / ReLU / tanh stay in f32.
    h = x_ref[...].astype(wdt)
    h = jnp.maximum(
        jnp.dot(h, w1_ref[...], preferred_element_type=f32) + b1_ref[...], 0.0)
    h = jnp.maximum(
        jnp.dot(h.astype(wdt), w2_ref[...], preferred_element_type=f32) + b2_ref[...], 0.0)
    h = jnp.maximum(
        jnp.dot(h.astype(wdt), w3_ref[...], preferred_element_type=f32) + b3_ref[...], 0.0)
    h = jnp.maximum(
        jnp.dot(h.astype(wdt), w4_ref[...], preferred_element_type=f32) + b4_ref[...], 0.0)

    # Fused lane-dense heads: columns [0, HEAD) are mean, [HEAD, 2*HEAD) are log_std.
    z = jnp.dot(h.astype(wdt), wh_ref[...], preferred_element_type=f32) + bh_ref[...]

    # Both stores are 128-lane aligned (unmasked vst); tanh only on the log_std half.
    out_ref[:, :HEAD] = z[:, :HEAD].astype(out_ref.dtype)
    out_ref[:, HEAD:] = (_C0 + _C1 * jnp.tanh(z[:, HEAD:])).astype(out_ref.dtype)


def prepare_actor_params(params, *, weight_dtype=jnp.bfloat16):
    """One-time packing of raw params for the kernel (call once, reuse).

    params: [w1,b1,w2,b2,w3,b3,w4,b4,wm,bm,ws,bs] with W stored as (in, out)
            and b as (1, out), all float32.
    Returns (weights, biases, act_dim) where the two act_dim-wide heads have
    been zero-padded to HEAD=128 columns each and fused into one (256, 256)
    weight / (1, 256) bias, and weights (not biases) cast to `weight_dtype`
    (None keeps f32).
    """
    w1, b1, w2, b2, w3, b3, w4, b4, wm, bm, ws, bs = params
    act_dim = wm.shape[-1]
    assert act_dim <= HEAD, "act_dim must be <= 128"

    padc = ((0, 0), (0, HEAD - act_dim))
    wh = jnp.concatenate([jnp.pad(wm, padc), jnp.pad(ws, padc)], axis=1)  # (256, 256)
    bh = jnp.concatenate([jnp.pad(bm, padc), jnp.pad(bs, padc)], axis=1)  # (1, 256)

    weights = [w1, w2, w3, w4, wh]
    biases = [b1, b2, b3, b4, bh]
    if weight_dtype is not None:
        weights = [w.astype(weight_dtype) for w in weights]
    # Biases stay f32 so the post-matmul add and all elementwise math is f32.
    return tuple(weights), tuple(biases), int(act_dim)


def actor_forward(x, packed, *, block_b=512):
    """x: (B, obs_dim) float32; packed: output of prepare_actor_params.

    Returns (mean, log_std), both (B, act_dim) float32.
    """
    weights, biases, act_dim = packed
    B, obs_dim = x.shape
    out_dim = 2 * HEAD

    # Batch tile: big enough to amortize per-step overhead, small enough that
    # large batches split into >=2 grid steps (feeds both v7x TensorCores).
    TB = max(8, min(block_b, _round_up(pl.cdiv(B, 2), 8)))

    # Only pad when the whole batch is smaller than one sublane tile; otherwise
    # let Pallas handle the ragged last block (padded rows are sliced off below).
    x_k = x
    b_rows = B
    if B < TB:
        x_k = jnp.pad(x, ((0, TB - B), (0, 0)))
        b_rows = TB
    grid = (pl.cdiv(b_rows, TB),)

    def resident(shape):
        # Same block every grid step -> stays VMEM-resident across the grid.
        return pl.BlockSpec(shape, lambda i: (0, 0))

    in_specs = [pl.BlockSpec((TB, obs_dim), lambda i: (i, 0))]
    operands = [x_k]
    for w, b in zip(weights, biases):
        in_specs.append(resident(w.shape))
        in_specs.append(resident(b.shape))
        operands.append(w)
        operands.append(b)

    out_specs = pl.BlockSpec((TB, out_dim), lambda i: (i, 0))

    flops = 2 * b_rows * (obs_dim * 256 + 256 * 512 + 512 * 256 + 256 * 256
                          + 256 * out_dim)
    bytes_accessed = int(sum(int(a.size) * a.dtype.itemsize for a in operands)
                         + b_rows * out_dim * 4)
    cost = pl.CostEstimate(flops=int(flops),
                           transcendentals=int(b_rows * HEAD),
                           bytes_accessed=bytes_accessed)

    out = pl.pallas_call(
        actor_kernel,
        out_shape=jax.ShapeDtypeStruct((b_rows, out_dim), jnp.float32),
        grid=grid,
        in_specs=in_specs,
        out_specs=out_specs,
        compiler_params=pltpu.CompilerParams(
            dimension_semantics=("parallel",),   # shard batch grid over v7x's 2 TCs
            vmem_limit_bytes=32 << 20,           # real footprint is a few MiB
        ),
        cost_estimate=cost,
    )(*operands)

    mean = out[:B, :act_dim]
    log_std = out[:B, HEAD:HEAD + act_dim]
    return mean, log_std


def init_linear(key, fan_in, fan_out):
    """PyTorch-style uniform(-1/sqrt(fan_in), 1/sqrt(fan_in)) init.
    Weight stored transposed as (fan_in, fan_out); bias as (1, fan_out)."""
    kw, kb = jax.random.split(key)
    bound = 1.0 / jnp.sqrt(jnp.float32(fan_in))
    w = jax.random.uniform(kw, (fan_in, fan_out), jnp.float32, -bound, bound)
    b = jax.random.uniform(kb, (1, fan_out), jnp.float32, -bound, bound)
    return w, b


def _reference(x, params):
    w1, b1, w2, b2, w3, b3, w4, b4, wm, bm, ws, bs = params
    h = jnp.maximum(x @ w1 + b1, 0.0)
    h = jnp.maximum(h @ w2 + b2, 0.0)
    h = jnp.maximum(h @ w3 + b3, 0.0)
    h = jnp.maximum(h @ w4 + b4, 0.0)
    mean = h @ wm + bm
    ls = jnp.tanh(h @ ws + bs)
    ls = LOG_STD_MIN + 0.5 * (LOG_STD_MAX - LOG_STD_MIN) * (ls + 1.0)
    return mean, ls


if __name__ == "__main__":
    # Small synthetic shapes consistent with the module: a flat observation MLP.
    batch = 2
    obs_dim = 32
    act_dim = 8

    root = jax.random.PRNGKey(0)
    keys = jax.random.split(root, 7)

    w1, b1 = init_linear(keys[0], obs_dim, 256)
    w2, b2 = init_linear(keys[1], 256, 512)
    w3, b3 = init_linear(keys[2], 512, 256)
    w4, b4 = init_linear(keys[3], 256, 256)
    wm, bm = init_linear(keys[4], 256, act_dim)
    ws, bs = init_linear(keys[5], 256, act_dim)
    params = [w1, b1, w2, b2, w3, b3, w4, b4, wm, bm, ws, bs]

    x = jax.random.normal(keys[6], (batch, obs_dim), jnp.float32)

    # One-time packing (done outside the forward path).
    packed_f32 = prepare_actor_params(params, weight_dtype=None)
    packed_bf16 = prepare_actor_params(params)  # default: bf16 weight storage

    # 1) f32 weights, tiny batch (single padded tile) -- exact-semantics check.
    mean, log_std = actor_forward(x, packed_f32)
    jax.block_until_ready((mean, log_std))
    ref_mean, ref_ls = _reference(x, params)
    assert mean.shape == (batch, act_dim) and log_std.shape == (batch, act_dim)
    assert jnp.allclose(mean, ref_mean, atol=1e-4, rtol=1e-4)
    assert jnp.allclose(log_std, ref_ls, atol=1e-4, rtol=1e-4)

    # 2) f32 weights, batch not divisible by the tile (grid > 1, ragged last block).
    x_big = jax.random.normal(jax.random.PRNGKey(1), (200, obs_dim), jnp.float32)
    mean_b, ls_b = actor_forward(x_big, packed_f32, block_b=64)
    jax.block_until_ready((mean_b, ls_b))
    ref_mean_b, ref_ls_b = _reference(x_big, params)
    assert mean_b.shape == (200, act_dim) and ls_b.shape == (200, act_dim)
    assert jnp.allclose(mean_b, ref_mean_b, atol=1e-4, rtol=1e-4)
    assert jnp.allclose(ls_b, ref_ls_b, atol=1e-4, rtol=1e-4)

    # 3) bf16 weight storage (f32 accumulation / epilogue) -- halves the
    #    dominant HBM/VMEM weight stream; looser tolerance vs. f32 reference.
    mean_bf, ls_bf = actor_forward(x, packed_bf16)
    jax.block_until_ready((mean_bf, ls_bf))
    assert jnp.allclose(mean_bf, ref_mean, atol=1e-1, rtol=1e-1)
    assert jnp.allclose(ls_bf, ref_ls, atol=1e-1, rtol=1e-1)

    mean_bb, ls_bb = actor_forward(x_big, packed_bf16)
    jax.block_until_ready((mean_bb, ls_bb))
    assert jnp.allclose(mean_bb, ref_mean_b, atol=1e-1, rtol=1e-1)
    assert jnp.allclose(ls_bb, ref_ls_b, atol=1e-1, rtol=1e-1)

    print("KERNEL_OK")
</pallas_src>

<mosaic_0001>
module attributes {stable_mosaic.version = 11 : i64} {
  func.func @actor_kernel(%arg0: i32, %arg1: memref<8x32xf32, #tpu.memory_space<vmem>>, %arg2: memref<32x256xf32, #tpu.memory_space<vmem>>, %arg3: memref<1x256xf32, #tpu.memory_space<vmem>>, %arg4: memref<256x512xf32, #tpu.memory_space<vmem>>, %arg5: memref<1x512xf32, #tpu.memory_space<vmem>>, %arg6: memref<512x256xf32, #tpu.memory_space<vmem>>, %arg7: memref<1x256xf32, #tpu.memory_space<vmem>>, %arg8: memref<256x256xf32, #tpu.memory_space<vmem>>, %arg9: memref<1x256xf32, #tpu.memory_space<vmem>>, %arg10: memref<256x256xf32, #tpu.memory_space<vmem>>, %arg11: memref<1x256xf32, #tpu.memory_space<vmem>>, %arg12: memref<8x256xf32, #tpu.memory_space<vmem>>) attributes {dimension_semantics = [#tpu.dimension_semantics<parallel>], iteration_bounds = array<i64: 1>, scalar_prefetch = 0 : i64, scratch_operands = 0 : i64, tpu.core_type = #tpu.core_type<tc>, window_params = [{transform_indices = @transform_0, window_bounds = array<i64: 8, 32>}, {pipeline_mode = #tpu.pipeline_mode<synchronous>, transform_indices = @transform_1, window_bounds = array<i64: 32, 256>}, {pipeline_mode = #tpu.pipeline_mode<synchronous>, transform_indices = @transform_2, window_bounds = array<i64: 1, 256>}, {pipeline_mode = #tpu.pipeline_mode<synchronous>, transform_indices = @transform_3, window_bounds = array<i64: 256, 512>}, {pipeline_mode = #tpu.pipeline_mode<synchronous>, transform_indices = @transform_4, window_bounds = array<i64: 1, 512>}, {pipeline_mode = #tpu.pipeline_mode<synchronous>, transform_indices = @transform_5, window_bounds = array<i64: 512, 256>}, {pipeline_mode = #tpu.pipeline_mode<synchronous>, transform_indices = @transform_6, window_bounds = array<i64: 1, 256>}, {pipeline_mode = #tpu.pipeline_mode<synchronous>, transform_indices = @transform_7, window_bounds = array<i64: 256, 256>}, {pipeline_mode = #tpu.pipeline_mode<synchronous>, transform_indices = @transform_8, window_bounds = array<i64: 1, 256>}, {pipeline_mode = #tpu.pipeline_mode<synchronous>, transform_indices = @transform_9, window_bounds = array<i64: 256, 256>}, {pipeline_mode = #tpu.pipeline_mode<synchronous>, transform_indices = @transform_10, window_bounds = array<i64: 1, 256>}, {transform_indices = @transform_11, window_bounds = array<i64: 8, 256>}]} {
    %c0 = arith.constant 0 : index
    %c0_0 = arith.constant 0 : index
    %0 = vector.load %arg1[%c0, %c0_0] : memref<8x32xf32, #tpu.memory_space<vmem>>, vector<8x32xf32>
    %c0_1 = arith.constant 0 : index
    %c0_2 = arith.constant 0 : index
    %1 = vector.load %arg2[%c0_1, %c0_2] : memref<32x256xf32, #tpu.memory_space<vmem>>, vector<32x256xf32>
    %cst = arith.constant dense<0.000000e+00> : vector<8x256xf32>
    %2 = tpu.matmul %0, %1, %cst {dimension_numbers = #tpu.dot_dimension_numbers<[1], [0], [0], [1], [0, 0, 1, 1], [], []>} : vector<8x32xf32>, vector<32x256xf32>, vector<8x256xf32> -> vector<8x256xf32>
    %c0_3 = arith.constant 0 : index
    %c0_4 = arith.constant 0 : index
    %3 = vector.load %arg3[%c0_3, %c0_4] : memref<1x256xf32, #tpu.memory_space<vmem>>, vector<1x256xf32>
    %4 = vector.broadcast %3 : vector<1x256xf32> to vector<8x256xf32>
    %5 = arith.addf %2, %4 : vector<8x256xf32>
    %cst_5 = arith.constant 0.000000e+00 : f32
    %6 = vector.broadcast %cst_5 : f32 to vector<8x256xf32>
    %7 = arith.maximumf %5, %6 : vector<8x256xf32>
    %c0_6 = arith.constant 0 : index
    %c0_7 = arith.constant 0 : index
    %8 = vector.load %arg4[%c0_6, %c0_7] : memref<256x512xf32, #tpu.memory_space<vmem>>, vector<256x512xf32>
    %cst_8 = arith.constant dense<0.000000e+00> : vector<8x512xf32>
    %9 = tpu.matmul %7, %8, %cst_8 {dimension_numbers = #tpu.dot_dimension_numbers<[1], [0], [0], [1], [0, 0, 1, 1], [], []>} : vector<8x256xf32>, vector<256x512xf32>, vector<8x512xf32> -> vector<8x512xf32>
    %c0_9 = arith.constant 0 : index
    %c0_10 = arith.constant 0 : index
    %10 = vector.load %arg5[%c0_9, %c0_10] : memref<1x512xf32, #tpu.memory_space<vmem>>, vector<1x512xf32>
    %11 = vector.broadcast %10 : vector<1x512xf32> to vector<8x512xf32>
    %12 = arith.addf %9, %11 : vector<8x512xf32>
    %cst_11 = arith.constant 0.000000e+00 : f32
    %13 = vector.broadcast %cst_11 : f32 to vector<8x512xf32>
    %14 = arith.maximumf %12, %13 : vector<8x512xf32>
    %c0_12 = arith.constant 0 : index
    %c0_13 = arith.constant 0 : index
    %15 = vector.load %arg6[%c0_12, %c0_13] : memref<512x256xf32, #tpu.memory_space<vmem>>, vector<512x256xf32>
    %cst_14 = arith.constant dense<0.000000e+00> : vector<8x256xf32>
    %16 = tpu.matmul %14, %15, %cst_14 {dimension_numbers = #tpu.dot_dimension_numbers<[1], [0], [0], [1], [0, 0, 1, 1], [], []>} : vector<8x512xf32>, vector<512x256xf32>, vector<8x256xf32> -> vector<8x256xf32>
    %c0_15 = arith.constant 0 : index
    %c0_16 = arith.constant 0 : index
    %17 = vector.load %arg7[%c0_15, %c0_16] : memref<1x256xf32, #tpu.memory_space<vmem>>, vector<1x256xf32>
    %18 = vector.broadcast %17 : vector<1x256xf32> to vector<8x256xf32>
    %19 = arith.addf %16, %18 : vector<8x256xf32>
    %cst_17 = arith.constant 0.000000e+00 : f32
    %20 = vector.broadcast %cst_17 : f32 to vector<8x256xf32>
    %21 = arith.maximumf %19, %20 : vector<8x256xf32>
    %c0_18 = arith.constant 0 : index
    %c0_19 = arith.constant 0 : index
    %22 = vector.load %arg8[%c0_18, %c0_19] : memref<256x256xf32, #tpu.memory_space<vmem>>, vector<256x256xf32>
    %cst_20 = arith.constant dense<0.000000e+00> : vector<8x256xf32>
    %23 = tpu.matmul %21, %22, %cst_20 {dimension_numbers = #tpu.dot_dimension_numbers<[1], [0], [0], [1], [0, 0, 1, 1], [], []>} : vector<8x256xf32>, vector<256x256xf32>, vector<8x256xf32> -> vector<8x256xf32>
    %c0_21 = arith.constant 0 : index
    %c0_22 = arith.constant 0 : index
    %24 = vector.load %arg9[%c0_21, %c0_22] : memref<1x256xf32, #tpu.memory_space<vmem>>, vector<1x256xf32>
    %25 = vector.broadcast %24 : vector<1x256xf32> to vector<8x256xf32>
    %26 = arith.addf %23, %25 : vector<8x256xf32>
    %cst_23 = arith.constant 0.000000e+00 : f32
    %27 = vector.broadcast %cst_23 : f32 to vector<8x256xf32>
    %28 = arith.maximumf %26, %27 : vector<8x256xf32>
    %c0_24 = arith.constant 0 : index
    %c0_25 = arith.constant 0 : index
    %29 = vector.load %arg10[%c0_24, %c0_25] : memref<256x256xf32, #tpu.memory_space<vmem>>, vector<256x256xf32>
    %cst_26 = arith.constant dense<0.000000e+00> : vector<8x256xf32>
    %30 = tpu.matmul %28, %29, %cst_26 {dimension_numbers = #tpu.dot_dimension_numbers<[1], [0], [0], [1], [0, 0, 1, 1], [], []>} : vector<8x256xf32>, vector<256x256xf32>, vector<8x256xf32> -> vector<8x256xf32>
    %c0_27 = arith.constant 0 : index
    %c0_28 = arith.constant 0 : index
    %31 = vector.load %arg11[%c0_27, %c0_28] : memref<1x256xf32, #tpu.memory_space<vmem>>, vector<1x256xf32>
    %32 = vector.broadcast %31 : vector<1x256xf32> to vector<8x256xf32>
    %33 = arith.addf %30, %32 : vector<8x256xf32>
    %34 = vector.extract_strided_slice %33 {offsets = [0, 0], sizes = [8, 128], strides = [1, 1]} : vector<8x256xf32> to vector<8x128xf32>
    %c0_29 = arith.constant 0 : index
    %c0_30 = arith.constant 0 : index
    %35 = vector.load %arg12[%c0_29, %c0_30] : memref<8x256xf32, #tpu.memory_space<vmem>>, vector<8x128xf32>
    tpu.vector_store %arg12[%c0_29, %c0_30], %34 {strides = array<i32>} : memref<8x256xf32, #tpu.memory_space<vmem>>, vector<8x128xf32>,
    %36 = vector.extract_strided_slice %33 {offsets = [0, 128], sizes = [8, 128], strides = [1, 1]} : vector<8x256xf32> to vector<8x128xf32>
    %37 = math.tanh %36 : vector<8x128xf32>
    %cst_31 = arith.constant 3.500000e+00 : f32
    %38 = vector.broadcast %cst_31 : f32 to vector<8x128xf32>
    %39 = arith.mulf %38, %37 : vector<8x128xf32>
    %cst_32 = arith.constant -1.500000e+00 : f32
    %40 = vector.broadcast %cst_32 : f32 to vector<8x128xf32>
    %41 = arith.addf %40, %39 : vector<8x128xf32>
    %c0_33 = arith.constant 0 : index
    %c128 = arith.constant 128 : index
    %42 = vector.load %arg12[%c0_33, %c128] : memref<8x256xf32, #tpu.memory_space<vmem>>, vector<8x128xf32>
    tpu.vector_store %arg12[%c0_33, %c128], %41 {strides = array<i32>} : memref<8x256xf32, #tpu.memory_space<vmem>>, vector<8x128xf32>,
    return
  }
  func.func @transform_0(%arg0: i32) -> (i32, i32) {
    %c0_i32 = arith.constant 0 : i32
    %c0_i32_0 = arith.constant 0 : i32
    return %arg0, %c0_i32 : i32, i32
  }
  func.func @transform_1(%arg0: i32) -> (i32, i32) {
    %c0_i32 = arith.constant 0 : i32
    %c0_i32_0 = arith.constant 0 : i32
    %c0_i32_1 = arith.constant 0 : i32
    return %c0_i32, %c0_i32_0 : i32, i32
  }
  func.func @transform_2(%arg0: i32) -> (i32, i32) {
    %c0_i32 = arith.constant 0 : i32
    %c0_i32_0 = arith.constant 0 : i32
    %c0_i32_1 = arith.constant 0 : i32
    return %c0_i32, %c0_i32_0 : i32, i32
  }
  func.func @transform_3(%arg0: i32) -> (i32, i32) {
    %c0_i32 = arith.constant 0 : i32
    %c0_i32_0 = arith.constant 0 : i32
    %c0_i32_1 = arith.constant 0 : i32
    return %c0_i32, %c0_i32_0 : i32, i32
  }
  func.func @transform_4(%arg0: i32) -> (i32, i32) {
    %c0_i32 = arith.constant 0 : i32
    %c0_i32_0 = arith.constant 0 : i32
    %c0_i32_1 = arith.constant 0 : i32
    return %c0_i32, %c0_i32_0 : i32, i32
  }
  func.func @transform_5(%arg0: i32) -> (i32, i32) {
    %c0_i32 = arith.constant 0 : i32
    %c0_i32_0 = arith.constant 0 : i32
    %c0_i32_1 = arith.constant 0 : i32
    return %c0_i32, %c0_i32_0 : i32, i32
  }
  func.func @transform_6(%arg0: i32) -> (i32, i32) {
    %c0_i32 = arith.constant 0 : i32
    %c0_i32_0 = arith.constant 0 : i32
    %c0_i32_1 = arith.constant 0 : i32
    return %c0_i32, %c0_i32_0 : i32, i32
  }
  func.func @transform_7(%arg0: i32) -> (i32, i32) {
    %c0_i32 = arith.constant 0 : i32
    %c0_i32_0 = arith.constant 0 : i32
    %c0_i32_1 = arith.constant 0 : i32
    return %c0_i32, %c0_i32_0 : i32, i32
  }
  func.func @transform_8(%arg0: i32) -> (i32, i32) {
    %c0_i32 = arith.constant 0 : i32
    %c0_i32_0 = arith.constant 0 : i32
    %c0_i32_1 = arith.constant 0 : i32
    return %c0_i32, %c0_i32_0 : i32, i32
  }
  func.func @transform_9(%arg0: i32) -> (i32, i32) {
    %c0_i32 = arith.constant 0 : i32
    %c0_i32_0 = arith.constant 0 : i32
    %c0_i32_1 = arith.constant 0 : i32
    return %c0_i32, %c0_i32_0 : i32, i32
  }
  func.func @transform_10(%arg0: i32) -> (i32, i32) {
    %c0_i32 = arith.constant 0 : i32
    %c0_i32_0 = arith.constant 0 : i32
    %c0_i32_1 = arith.constant 0 : i32
    return %c0_i32, %c0_i32_0 : i32, i32
  }
  func.func @transform_11(%arg0: i32) -> (i32, i32) {
    %c0_i32 = arith.constant 0 : i32
    %c0_i32_0 = arith.constant 0 : i32
    return %arg0, %c0_i32 : i32, i32
  }
}

</mosaic_0001>

<llo_original>
// kernel: tpu_custom_call.1
$region0: #{tpu_custom_call.1}
  #allocation0 [shape = 'u32[]', space=smem, size = 0x4, offset = 0x4, fixed_abs, tag = 'smem constant byte address 0x4 - core index']
  #allocation1 [shape = 'u32[144,128]{1,0:T(1,128)}', space=vmem, size = 0x12000, scoped, tag = 'internal scratch']
  %s0 = inlined_call_operand.hbm [shape: f32[8,32], index: 0, kind: input, shape index: {}]
  %s1 = inlined_call_operand.hbm [shape: f32[32,256], index: 1, kind: input, shape index: {}]
  %s2 = inlined_call_operand.vmem [shape: f32[1,256], index: 2, kind: input, shape index: {}]
  %s3 = inlined_call_operand.hbm [shape: f32[256,512], index: 3, kind: input, shape index: {}]
  %s4 = inlined_call_operand.vmem [shape: f32[1,512], index: 4, kind: input, shape index: {}]
  %s5 = inlined_call_operand.hbm [shape: f32[512,256], index: 5, kind: input, shape index: {}]
  %s6 = inlined_call_operand.vmem [shape: f32[1,256], index: 6, kind: input, shape index: {}]
  %s7 = inlined_call_operand.hbm [shape: f32[256,256], index: 7, kind: input, shape index: {}]
  %s8 = inlined_call_operand.vmem [shape: f32[1,256], index: 8, kind: input, shape index: {}]
  %s9 = inlined_call_operand.hbm [shape: f32[256,256], index: 9, kind: input, shape index: {}]
  %s10 = inlined_call_operand.vmem [shape: f32[1,256], index: 10, kind: input, shape index: {}]
  %s11 = inlined_call_operand.hbm [shape: f32[8,256], index: 11, kind: output, shape index: {}]
  %s12 = sld [smem:[#allocation0]]
  $region78: #{tpu_custom_call.1} parent=0
    _
  %s14 = ssub.s32 1, %s12
  %s15 = scalar_select 0, %s14, %s12
  $region1: #{tpu_custom_call.1} parent=0
    #allocation2 [shape = 'u8[4096]{0}', space=vmem, size = 0x1000, scoped, tag = 'input window, operand 0, single buffered']
    #allocation3 [shape = 's32[1]{0}', space=sflag, size = 0x4, scoped, tag = 'scoped memory for tpu_custom_call.1']
    #allocation4 [shape = 's32[1]{0}', space=sflag, size = 0x4, scoped, tag = 'scoped memory for tpu_custom_call.1']
    #allocation5 [shape = 'u8[32768]{0}', space=vmem, size = 0x8000, scoped, tag = 'input window, operand 1, single buffered']
    #allocation6 [shape = 's32[1]{0}', space=sflag, size = 0x4, scoped, tag = 'scoped memory for tpu_custom_call.1']
    #allocation7 [shape = 'u8[524288]{0}', space=vmem, size = 0x80000, scoped, tag = 'input window, operand 3, single buffered']
    #allocation8 [shape = 'u8[524288]{0}', space=vmem, size = 0x80000, scoped, tag = 'input window, operand 5, single buffered']
    #allocation9 [shape = 's32[1]{0}', space=sflag, size = 0x4, scoped, tag = 'scoped memory for tpu_custom_call.1']
    #allocation10 [shape = 'u8[262144]{0}', space=vmem, size = 0x40000, scoped, tag = 'input window, operand 7, single buffered']
    #allocation11 [shape = 'u8[262144]{0}', space=vmem, size = 0x40000, scoped, tag = 'input window, operand 9, single buffered']
    #allocation12 [shape = 's32[1]{0}', space=sflag, size = 0x4, scoped, tag = 'scoped memory for tpu_custom_call.1']
    #allocation13 [shape = 'u8[8192]{0}', space=vmem, size = 0x2000, scoped, tag = 'output window, operand 0, single buffered']
    %16 = vsyncpa [#allocation3], 0
    %17 = vsyncpa [#allocation6], 0
    %18 = vsyncpa [#allocation9], 0
    %19 = vsyncpa [#allocation12], 0
    %20 = vsyncpa [#allocation4], 0
    // Predicated region
    $region2: #{tpu_custom_call.1} parent=1 // pred_check
      _
    $region3: #{tpu_custom_call.1} parent=1 // pred_check_branch
      %22 = sbr.rel (0) target = $region5
    $region4: #{tpu_custom_call.1} parent=1 // pred_region
      %s24 = ssub.s32 128, 128
      %25 = vsyncadd [#allocation3], %s24
      %s27 = sshll.u32 [#allocation2], 4
      %s28 = int_to_ptr.vmem [resolvable:$true] %s27
      %30 = dma.hbm_to_vmem [thread:$0]  %s0, 128, %s28, [#allocation3]
    $region5: #{tpu_custom_call.1} parent=1 // pred_fallthru
      _
    // Predicated region
    $region6: #{tpu_custom_call.1} parent=1 // pred_check
      _
    $region7: #{tpu_custom_call.1} parent=1 // pred_check_branch
      %32 = sbr.rel (0) target = $region9
    $region8: #{tpu_custom_call.1} parent=1 // pred_region
      %s34 = ssub.s32 1024, 1024
      %35 = vsyncadd [#allocation6], %s34
      %s36 = sshll.u32 [#allocation5], 4
      %s37 = int_to_ptr.vmem [resolvable:$true] %s36
      %42 = dma.hbm_to_vmem [thread:$0]  %s1, 1024, %s37, [#allocation6], 256, 256, 16
    $region9: #{tpu_custom_call.1} parent=1 // pred_fallthru
      _
    // Predicated region
    $region10: #{tpu_custom_call.1} parent=1 // pred_check
      _
    $region11: #{tpu_custom_call.1} parent=1 // pred_check_branch
      %44 = sbr.rel (0) target = $region13
    $region12: #{tpu_custom_call.1} parent=1 // pred_region
      _
    $region13: #{tpu_custom_call.1} parent=1 // pred_fallthru
      _
    // Predicated region
    $region14: #{tpu_custom_call.1} parent=1 // pred_check
      _
    $region15: #{tpu_custom_call.1} parent=1 // pred_check_branch
      %46 = sbr.rel (0) target = $region17
    $region16: #{tpu_custom_call.1} parent=1 // pred_region
      %s48 = ssub.s32 16384, 16384
      %49 = vsyncadd [#allocation6], %s48
      %s50 = sshll.u32 [#allocation7], 4
      %s51 = int_to_ptr.vmem [resolvable:$true] %s50
      %56 = dma.hbm_to_vmem [thread:$0]  %s3, 16384, %s51, [#allocation6], 512, 512, 32
    $region17: #{tpu_custom_call.1} parent=1 // pred_fallthru
      _
    // Predicated region
    $region18: #{tpu_custom_call.1} parent=1 // pred_check
      _
    $region19: #{tpu_custom_call.1} parent=1 // pred_check_branch
      %58 = sbr.rel (0) target = $region21
    $region20: #{tpu_custom_call.1} parent=1 // pred_region
      _
    $region21: #{tpu_custom_call.1} parent=1 // pred_fallthru
      _
    // Predicated region
    $region22: #{tpu_custom_call.1} parent=1 // pred_check
      _
    $region23: #{tpu_custom_call.1} parent=1 // pred_check_branch
      %60 = sbr.rel (0) target = $region25
    $region24: #{tpu_custom_call.1} parent=1 // pred_region
      %s62 = ssub.s32 16384, 16384
      %63 = vsyncadd [#allocation9], %s62
      %s64 = sshll.u32 [#allocation8], 4
      %s65 = int_to_ptr.vmem [resolvable:$true] %s64
      %70 = dma.hbm_to_vmem [thread:$0]  %s5, 16384, %s65, [#allocation9], 256, 256, 16
    $region25: #{tpu_custom_call.1} parent=1 // pred_fallthru
      _
    // Predicated region
    $region26: #{tpu_custom_call.1} parent=1 // pred_check
      _
    $region27: #{tpu_custom_call.1} parent=1 // pred_check_branch
      %72 = sbr.rel (0) target = $region29
    $region28: #{tpu_custom_call.1} parent=1 // pred_region
      _
    $region29: #{tpu_custom_call.1} parent=1 // pred_fallthru
      _
    // Predicated region
    $region30: #{tpu_custom_call.1} parent=1 // pred_check
      _
    $region31: #{tpu_custom_call.1} parent=1 // pred_check_branch
      %74 = sbr.rel (0) target = $region33
    $region32: #{tpu_custom_call.1} parent=1 // pred_region
      %s76 = ssub.s32 8192, 8192
      %77 = vsyncadd [#allocation9], %s76
      %s78 = sshll.u32 [#allocation10], 4
      %s79 = int_to_ptr.vmem [resolvable:$true] %s78
      %84 = dma.hbm_to_vmem [thread:$0]  %s7, 8192, %s79, [#allocation9], 256, 256, 16
    $region33: #{tpu_custom_call.1} parent=1 // pred_fallthru
      _
    // Predicated region
    $region34: #{tpu_custom_call.1} parent=1 // pred_check
      _
    $region35: #{tpu_custom_call.1} parent=1 // pred_check_branch
      %86 = sbr.rel (0) target = $region37
    $region36: #{tpu_custom_call.1} parent=1 // pred_region
      _
    $region37: #{tpu_custom_call.1} parent=1 // pred_fallthru
      _
    // Predicated region
    $region38: #{tpu_custom_call.1} parent=1 // pred_check
      _
    $region39: #{tpu_custom_call.1} parent=1 // pred_check_branch
      %88 = sbr.rel (0) target = $region41
    $region40: #{tpu_custom_call.1} parent=1 // pred_region
      %s90 = ssub.s32 8192, 8192
      %91 = vsyncadd [#allocation12], %s90
      %s92 = sshll.u32 [#allocation11], 4
      %s93 = int_to_ptr.vmem [resolvable:$true] %s92
      %98 = dma.hbm_to_vmem [thread:$0]  %s9, 8192, %s93, [#allocation12], 256, 256, 16
    $region41: #{tpu_custom_call.1} parent=1 // pred_fallthru
      _
    // Predicated region
    $region42: #{tpu_custom_call.1} parent=1 // pred_check
      _
    $region43: #{tpu_custom_call.1} parent=1 // pred_check_branch
      %100 = sbr.rel (0) target = $region45
    $region44: #{tpu_custom_call.1} parent=1 // pred_region
      _
    $region45: #{tpu_custom_call.1} parent=1 // pred_fallthru
      _
    // Predicated region
    $region46: #{tpu_custom_call.1} parent=1 // pred_check
      _
    $region47: #{tpu_custom_call.1} parent=1 // pred_check_branch
      %102 = sbr.rel (0) target = $region49
    $region48: #{tpu_custom_call.1} parent=1 // pred_region
      %103 = dma.done [#allocation3], 128
    $region49: #{tpu_custom_call.1} parent=1 // pred_fallthru
      _
    // Predicated region
    $region50: #{tpu_custom_call.1} parent=1 // pred_check
      _
    $region51: #{tpu_custom_call.1} parent=1 // pred_check_branch
      %105 = sbr.rel (0) target = $region53
    $region52: #{tpu_custom_call.1} parent=1 // pred_region
      %106 = dma.done [#allocation6], 1024
    $region53: #{tpu_custom_call.1} parent=1 // pred_fallthru
      _
    // Predicated region
    $region54: #{tpu_custom_call.1} parent=1 // pred_check
      _
    $region55: #{tpu_custom_call.1} parent=1 // pred_check_branch
      %108 = sbr.rel (0) target = $region57
    $region56: #{tpu_custom_call.1} parent=1 // pred_region
      %109 = dma.done [#allocation6], 16384
    $region57: #{tpu_custom_call.1} parent=1 // pred_fallthru
      _
    // Predicated region
    $region58: #{tpu_custom_call.1} parent=1 // pred_check
      _
    $region59: #{tpu_custom_call.1} parent=1 // pred_check_branch
      %111 = sbr.rel (0) target = $region61
    $region60: #{tpu_custom_call.1} parent=1 // pred_region
      %112 = dma.done [#allocation9], 16384
    $region61: #{tpu_custom_call.1} parent=1 // pred_fallthru
      _
    // Predicated region
    $region62: #{tpu_custom_call.1} parent=1 // pred_check
      _
    $region63: #{tpu_custom_call.1} parent=1 // pred_check_branch
      %114 = sbr.rel (0) target = $region65
    $region64: #{tpu_custom_call.1} parent=1 // pred_region
      %115 = dma.done [#allocation9], 8192
    $region65: #{tpu_custom_call.1} parent=1 // pred_fallthru
      _
    // Predicated region
    $region66: #{tpu_custom_call.1} parent=1 // pred_check
      _
    $region67: #{tpu_custom_call.1} parent=1 // pred_check_branch
      %117 = sbr.rel (0) target = $region69
    $region68: #{tpu_custom_call.1} parent=1 // pred_region
      %118 = dma.done [#allocation12], 8192
    $region69: #{tpu_custom_call.1} parent=1 // pred_fallthru
      _
    %v119 = vld [vmem:[#allocation2] sm:$0xff]
    %v120 = vld [vmem:[#allocation5] sm:$0xff]
    %v121 = vld [vmem:[#allocation5 + $0x8] sm:$0xff]
    %v122 = vld [vmem:[#allocation5 + $0x10] sm:$0xff]
    %v123 = vld [vmem:[#allocation5 + $0x18] sm:$0xff]
    %v124 = vld [vmem:[#allocation5 + $0x20] sm:$0xff]
    %v125 = vld [vmem:[#allocation5 + $0x28] sm:$0xff]
    %v126 = vld [vmem:[#allocation5 + $0x30] sm:$0xff]
    %v127 = vld [vmem:[#allocation5 + $0x38] sm:$0xff]
    %v128 = vld [vmem:[%s2] sm:$0x3]
    %v130 = vlaneseq
    %v131 = vshrl.u32 %v130, 7
    %v132 = vsub.s32 0, %v131
    %v133 = vrot.slane %v128, %v132
    %v134 = vlaneseq
    %v135 = vshrl.u32 %v134, 7
    %v136 = vsub.s32 1, %v135
    %v137 = vrot.slane %v128, %v136
    %vm140 = vcmask 261120
    %v142 = vsel %vm140, %v119, 0
    %144 = vmatprep.subr.mxu0 %v121
    %145 = vmatpush1.msra.mxu0 %v120
    %146 = vmatprep.subr.mxu0 %v123
    %147 = vmatpush1.msra.mxu0 %v122
    %148 = vmatprep.subr.mxu0 %v125
    %149 = vmatpush1.msra.mxu0 %v124
    %150 = vmatprep.subr.mxu0 %v127
    %151 = vmatpush1.msra.mxu0 %v126
    %152 = vmatprep.subr.mxu0 0.0
    %153 = vmatpush1.msra.mxu0 0.0
    %154 = vmatprep.subr.mxu0 0.0
    %155 = vmatpush1.msra.mxu0 0.0
    %156 = vmatprep.subr.mxu0 0.0
    %157 = vmatpush1.msra.mxu0 0.0
    %158 = vmatprep.subr.mxu0 0.0
    %159 = vmatpush1.msra.mxu0 0.0
    %160 = vmatprep.subr.mxu0 0.0
    %161 = vmatpush1.msra.mxu0 0.0
    %162 = vmatprep.subr.mxu0 0.0
    %163 = vmatpush1.msra.mxu0 0.0
    %164 = vmatprep.subr.mxu0 0.0
    %165 = vmatpush1.msra.mxu0 0.0
    %166 = vmatprep.subr.mxu0 0.0
    %167 = vmatpush1.msra.mxu0 0.0
    %168 = vmatprep.subr.mxu0 0.0
    %169 = vmatpush1.msra.mxu0 0.0
    %170 = vmatprep.subr.mxu0 0.0
    %171 = vmatpush1.msra.mxu0 0.0
    %172 = vmatprep.subr.mxu0 0.0
    %173 = vmatpush1.msra.mxu0 0.0
    %174 = vmatprep.subr.mxu0 0.0
    %175 = vmatpush1.msra.mxu0 0.0
    %176 = vmatprep.subr.mxu0 0.0
    %177 = vmatpush1.msra.mxu0 0.0
    %178 = vmatprep.subr.mxu0 0.0
    %179 = vmatpush1.msra.mxu0 0.0
    %180 = vmatprep.subr.mxu0 0.0
    %181 = vmatpush1.msra.mxu0 0.0
    %182 = vmatprep.subr.mxu0 0.0
    %183 = vmatpush1.msra.mxu0 0.0
    %184 = vmatprep.subr.mxu0 0.0
    %185 = vmatpush1.msra.mxu0 0.0
    %186 = vmatprep.subr.mxu0 0.0
    %187 = vmatpush1.msra.mxu0 0.0
    %188 = vmatprep.subr.mxu0 0.0
    %189 = vmatpush1.msra.mxu0 0.0
    %190 = vmatprep.subr.mxu0 0.0
    %191 = vmatpush1.msra.mxu0 0.0
    %192 = vmatprep.subr.mxu0 0.0
    %193 = vmatpush1.msra.mxu0 0.0
    %194 = vmatprep.subr.mxu0 0.0
    %195 = vmatpush1.msra.mxu0 0.0
    %196 = vmatprep.subr.mxu0 0.0
    %197 = vmatpush1.msra.mxu0 0.0
    %198 = vmatprep.subr.mxu0 0.0
    %199 = vmatpush1.msra.mxu0 0.0
    %200 = vmatprep.subr.mxu0 0.0
    %201 = vmatpush1.msra.mxu0 0.0
    %202 = vmatprep.subr.mxu0 0.0
    %203 = vmatpush1.msra.mxu0 0.0
    %204 = vmatprep.subr.mxu0 0.0
    %205 = vmatpush1.msra.mxu0 0.0
    %206 = vmatprep.subr.mxu0 0.0
    %207 = vmatpush1.msra.mxu0 0.0
    %208 = vmatprep.mubr.f32.mxu0 0.0
    %209 = vmatmul.mubr.f32.gmra.mrb[0].mxu0 %v142
    %v210 = vpop.f32.mrb[0].mxu0
    %v211 = vadd.f32 %v133, %v210
    %v212 = vpop.f32.mrb[0].mxu0
    %v213 = vadd.f32 %v137, %v212
    %214 = vdwg.mxu0
    %v215 = vmax.f32 %v211, 0.0
    %v216 = vmax.f32 %v213, 0.0
    %v217 = vld [vmem:[#allocation7] sm:$0xff]
    %v218 = vld [vmem:[#allocation7 + $0x8] sm:$0xff]
    %v219 = vld [vmem:[#allocation7 + $0x10] sm:$0xff]
    %v220 = vld [vmem:[#allocation7 + $0x18] sm:$0xff]
    %v221 = vld [vmem:[#allocation7 + $0x20] sm:$0xff]
    %v222 = vld [vmem:[#allocation7 + $0x28] sm:$0xff]
    %v223 = vld [vmem:[#allocation7 + $0x30] sm:$0xff]
    %v224 = vld [vmem:[#allocation7 + $0x38] sm:$0xff]
    %v225 = vld [vmem:[#allocation7 + $0x40] sm:$0xff]
    %v226 = vld [vmem:[#allocation7 + $0x48] sm:$0xff]
    %v227 = vld [vmem:[#allocation7 + $0x50] sm:$0xff]
    %v228 = vld [vmem:[#allocation7 + $0x58] sm:$0xff]
    %v229 = vld [vmem:[#allocation7 + $0x60] sm:$0xff]
    %v230 = vld [vmem:[#allocation7 + $0x68] sm:$0xff]
    %v231 = vld [vmem:[#allocation7 + $0x70] sm:$0xff]
    %v232 = vld [vmem:[#allocation7 + $0x78] sm:$0xff]
    %v233 = vld [vmem:[#allocation7 + $0x80] sm:$0xff]
    %v234 = vld [vmem:[#allocation7 + $0x88] sm:$0xff]
    %v235 = vld [vmem:[#allocation7 + $0x90] sm:$0xff]
    %v236 = vld [vmem:[#allocation7 + $0x98] sm:$0xff]
    %v237 = vld [vmem:[#allocation7 + $0xa0] sm:$0xff]
    %v238 = vld [vmem:[#allocation7 + $0xa8] sm:$0xff]
    %v239 = vld [vmem:[#allocation7 + $0xb0] sm:$0xff]
    %v240 = vld [vmem:[#allocation7 + $0xb8] sm:$0xff]
    %v241 = vld [vmem:[#allocation7 + $0xc0] sm:$0xff]
    %v242 = vld [vmem:[#allocation7 + $0xc8] sm:$0xff]
    %v243 = vld [vmem:[#allocation7 + $0xd0] sm:$0xff]
    %v244 = vld [vmem:[#allocation7 + $0xd8] sm:$0xff]
    %v245 = vld [vmem:[#allocation7 + $0xe0] sm:$0xff]
    %v246 = vld [vmem:[#allocation7 + $0xe8] sm:$0xff]
    %v247 = vld [vmem:[#allocation7 + $0xf0] sm:$0xff]
    %v248 = vld [vmem:[#allocation7 + $0xf8] sm:$0xff]
    %v249 = vld [vmem:[#allocation7 + $0x100] sm:$0xff]
    %v250 = vld [vmem:[#allocation7 + $0x108] sm:$0xff]
    %v251 = vld [vmem:[#allocation7 + $0x110] sm:$0xff]
    %v252 = vld [vmem:[#allocation7 + $0x118] sm:$0xff]
    %v253 = vld [vmem:[#allocation7 + $0x120] sm:$0xff]
    %v254 = vld [vmem:[#allocation7 + $0x128] sm:$0xff]
    %v255 = vld [vmem:[#allocation7 + $0x130] sm:$0xff]
    %v256 = vld [vmem:[#allocation7 + $0x138] sm:$0xff]
    %v257 = vld [vmem:[#allocation7 + $0x140] sm:$0xff]
    %v258 = vld [vmem:[#allocation7 + $0x148] sm:$0xff]
    %v259 = vld [vmem:[#allocation7 + $0x150] sm:$0xff]
    %v260 = vld [vmem:[#allocation7 + $0x158] sm:$0xff]
    %v261 = vld [vmem:[#allocation7 + $0x160] sm:$0xff]
    %v262 = vld [vmem:[#allocation7 + $0x168] sm:$0xff]
    %v263 = vld [vmem:[#allocation7 + $0x170] sm:$0xff]
    %v264 = vld [vmem:[#allocation7 + $0x178] sm:$0xff]
    %v265 = vld [vmem:[#allocation7 + $0x180] sm:$0xff]
    %v266 = vld [vmem:[#allocation7 + $0x188] sm:$0xff]
    %v267 = vld [vmem:[#allocation7 + $0x190] sm:$0xff]
    %v268 = vld [vmem:[#allocation7 + $0x198] sm:$0xff]
    %v269 = vld [vmem:[#allocation7 + $0x1a0] sm:$0xff]
    %v270 = vld [vmem:[#allocation7 + $0x1a8] sm:$0xff]
    %v271 = vld [vmem:[#allocation7 + $0x1b0] sm:$0xff]
    %v272 = vld [vmem:[#allocation7 + $0x1b8] sm:$0xff]
    %v273 = vld [vmem:[#allocation7 + $0x1c0] sm:$0xff]
    %v274 = vld [vmem:[#allocation7 + $0x1c8] sm:$0xff]
    %v275 = vld [vmem:[#allocation7 + $0x1d0] sm:$0xff]
    %v276 = vld [vmem:[#allocation7 + $0x1d8] sm:$0xff]
    %v277 = vld [vmem:[#allocation7 + $0x1e0] sm:$0xff]
    %v278 = vld [vmem:[#allocation7 + $0x1e8] sm:$0xff]
    %v279 = vld [vmem:[#allocation7 + $0x1f0] sm:$0xff]
    %v280 = vld [vmem:[#allocation7 + $0x1f8] sm:$0xff]
    %v281 = vld [vmem:[#allocation7 + $0x200] sm:$0xff]
    %v282 = vld [vmem:[#allocation7 + $0x208] sm:$0xff]
    %v283 = vld [vmem:[#allocation7 + $0x210] sm:$0xff]
    %v284 = vld [vmem:[#allocation7 + $0x218] sm:$0xff]
    %v285 = vld [vmem:[#allocation7 + $0x220] sm:$0xff]
    %v286 = vld [vmem:[#allocation7 + $0x228] sm:$0xff]
    %v287 = vld [vmem:[#allocation7 + $0x230] sm:$0xff]
    %v288 = vld [vmem:[#allocation7 + $0x238] sm:$0xff]
    %v289 = vld [vmem:[#allocation7 + $0x240] sm:$0xff]
    %v290 = vld [vmem:[#allocation7 + $0x248] sm:$0xff]
    %v291 = vld [vmem:[#allocation7 + $0x250] sm:$0xff]
    %v292 = vld [vmem:[#allocation7 + $0x258] sm:$0xff]
    %v293 = vld [vmem:[#allocation7 + $0x260] sm:$0xff]
    %v294 = vld [vmem:[#allocation7 + $0x268] sm:$0xff]
    %v295 = vld [vmem:[#allocation7 + $0x270] sm:$0xff]
    %v296 = vld [vmem:[#allocation7 + $0x278] sm:$0xff]
    %v297 = vld [vmem:[#allocation7 + $0x280] sm:$0xff]
    %v298 = vld [vmem:[#allocation7 + $0x288] sm:$0xff]
    %v299 = vld [vmem:[#allocation7 + $0x290] sm:$0xff]
    %v300 = vld [vmem:[#allocation7 + $0x298] sm:$0xff]
    %v301 = vld [vmem:[#allocation7 + $0x2a0] sm:$0xff]
    %v302 = vld [vmem:[#allocation7 + $0x2a8] sm:$0xff]
    %v303 = vld [vmem:[#allocation7 + $0x2b0] sm:$0xff]
    %v304 = vld [vmem:[#allocation7 + $0x2b8] sm:$0xff]
    %v305 = vld [vmem:[#allocation7 + $0x2c0] sm:$0xff]
    %v306 = vld [vmem:[#allocation7 + $0x2c8] sm:$0xff]
    %v307 = vld [vmem:[#allocation7 + $0x2d0] sm:$0xff]
    %v308 = vld [vmem:[#allocation7 + $0x2d8] sm:$0xff]
    %v309 = vld [vmem:[#allocation7 + $0x2e0] sm:$0xff]
    %v310 = vld [vmem:[#allocation7 + $0x2e8] sm:$0xff]
    %v311 = vld [vmem:[#allocation7 + $0x2f0] sm:$0xff]
    %v312 = vld [vmem:[#allocation7 + $0x2f8] sm:$0xff]
    %v313 = vld [vmem:[#allocation7 + $0x300] sm:$0xff]
    %v314 = vld [vmem:[#allocation7 + $0x308] sm:$0xff]
    %v315 = vld [vmem:[#allocation7 + $0x310] sm:$0xff]
    %v316 = vld [vmem:[#allocation7 + $0x318] sm:$0xff]
    %v317 = vld [vmem:[#allocation7 + $0x320] sm:$0xff]
    %v318 = vld [vmem:[#allocation7 + $0x328] sm:$0xff]
    %v319 = vld [vmem:[#allocation7 + $0x330] sm:$0xff]
    %v320 = vld [vmem:[#allocation7 + $0x338] sm:$0xff]
    %v321 = vld [vmem:[#allocation7 + $0x340] sm:$0xff]
    %v322 = vld [vmem:[#allocation7 + $0x348] sm:$0xff]
    %v323 = vld [vmem:[#allocation7 + $0x350] sm:$0xff]
    %v324 = vld [vmem:[#allocation7 + $0x358] sm:$0xff]
    %v325 = vld [vmem:[#allocation7 + $0x360] sm:$0xff]
    %v326 = vld [vmem:[#allocation7 + $0x368] sm:$0xff]
    %v327 = vld [vmem:[#allocation7 + $0x370] sm:$0xff]
    %v328 = vld [vmem:[#allocation7 + $0x378] sm:$0xff]
    %v329 = vld [vmem:[#allocation7 + $0x380] sm:$0xff]
    %v330 = vld [vmem:[#allocation7 + $0x388] sm:$0xff]
    %v331 = vld [vmem:[#allocation7 + $0x390] sm:$0xff]
    %v332 = vld [vmem:[#allocation7 + $0x398] sm:$0xff]
    %v333 = vld [vmem:[#allocation7 + $0x3a0] sm:$0xff]
    %v334 = vld [vmem:[#allocation7 + $0x3a8] sm:$0xff]
    %v335 = vld [vmem:[#allocation7 + $0x3b0] sm:$0xff]
    %v336 = vld [vmem:[#allocation7 + $0x3b8] sm:$0xff]
    %v337 = vld [vmem:[#allocation7 + $0x3c0] sm:$0xff]
    %v338 = vld [vmem:[#allocation7 + $0x3c8] sm:$0xff]
    %v339 = vld [vmem:[#allocation7 + $0x3d0] sm:$0xff]
    %v340 = vld [vmem:[#allocation7 + $0x3d8] sm:$0xff]
    %v341 = vld [vmem:[#allocation7 + $0x3e0] sm:$0xff]
    %v342 = vld [vmem:[#allocation7 + $0x3e8] sm:$0xff]
    %v343 = vld [vmem:[#allocation7 + $0x3f0] sm:$0xff]
    %v344 = vld [vmem:[#allocation7 + $0x3f8] sm:$0xff]
    %v345 = vld [vmem:[%s4] sm:$0xf]
    %v347 = vlaneseq
    %v348 = vshrl.u32 %v347, 7
    %v349 = vsub.s32 0, %v348
    %v350 = vrot.slane %v345, %v349
    %v351 = vlaneseq
    %v352 = vshrl.u32 %v351, 7
    %v353 = vsub.s32 1, %v352
    %v354 = vrot.slane %v345, %v353
    %v355 = vlaneseq
    %v356 = vshrl.u32 %v355, 7
    %v357 = vsub.s32 2, %v356
    %v358 = vrot.slane %v345, %v357
    %v359 = vlaneseq
    %v360 = vshrl.u32 %v359, 7
    %v361 = vsub.s32 3, %v360
    %v362 = vrot.slane %v345, %v361
    %367 = vmatprep.subr.mxu0 %v218
    %368 = vmatpush1.msra.mxu0 %v217
    %369 = vmatprep.subr.mxu0 %v222
    %370 = vmatpush1.msra.mxu0 %v221
    %371 = vmatprep.subr.mxu0 %v226
    %372 = vmatpush1.msra.mxu0 %v225
    %373 = vmatprep.subr.mxu0 %v230
    %374 = vmatpush1.msra.mxu0 %v229
    %375 = vmatprep.subr.mxu0 %v234
    %376 = vmatpush1.msra.mxu0 %v233
    %377 = vmatprep.subr.mxu0 %v238
    %378 = vmatpush1.msra.mxu0 %v237
    %379 = vmatprep.subr.mxu0 %v242
    %380 = vmatpush1.msra.mxu0 %v241
    %381 = vmatprep.subr.mxu0 %v246
    %382 = vmatpush1.msra.mxu0 %v245
    %383 = vmatprep.subr.mxu0 %v250
    %384 = vmatpush1.msra.mxu0 %v249
    %385 = vmatprep.subr.mxu0 %v254
    %386 = vmatpush1.msra.mxu0 %v253
    %387 = vmatprep.subr.mxu0 %v258
    %388 = vmatpush1.msra.mxu0 %v257
    %389 = vmatprep.subr.mxu0 %v262
    %390 = vmatpush1.msra.mxu0 %v261
    %391 = vmatprep.subr.mxu0 %v266
    %392 = vmatpush1.msra.mxu0 %v265
    %393 = vmatprep.subr.mxu0 %v270
    %394 = vmatpush1.msra.mxu0 %v269
    %395 = vmatprep.subr.mxu0 %v274
    %396 = vmatpush1.msra.mxu0 %v273
    %397 = vmatprep.subr.mxu0 %v278
    %398 = vmatpush1.msra.mxu0 %v277
    %399 = vmatprep.subr.mxu0 %v282
    %400 = vmatpush1.msra.mxu0 %v281
    %401 = vmatprep.subr.mxu0 %v286
    %402 = vmatpush1.msra.mxu0 %v285
    %403 = vmatprep.subr.mxu0 %v290
    %404 = vmatpush1.msra.mxu0 %v289
    %405 = vmatprep.subr.mxu0 %v294
    %406 = vmatpush1.msra.mxu0 %v293
    %407 = vmatprep.subr.mxu0 %v298
    %408 = vmatpush1.msra.mxu0 %v297
    %409 = vmatprep.subr.mxu0 %v302
    %410 = vmatpush1.msra.mxu0 %v301
    %411 = vmatprep.subr.mxu0 %v306
    %412 = vmatpush1.msra.mxu0 %v305
    %413 = vmatprep.subr.mxu0 %v310
    %414 = vmatpush1.msra.mxu0 %v309
    %415 = vmatprep.subr.mxu0 %v314
    %416 = vmatpush1.msra.mxu0 %v313
    %417 = vmatprep.subr.mxu0 %v318
    %418 = vmatpush1.msra.mxu0 %v317
    %419 = vmatprep.subr.mxu0 %v322
    %420 = vmatpush1.msra.mxu0 %v321
    %421 = vmatprep.subr.mxu0 %v326
    %422 = vmatpush1.msra.mxu0 %v325
    %423 = vmatprep.subr.mxu0 %v330
    %424 = vmatpush1.msra.mxu0 %v329
    %425 = vmatprep.subr.mxu0 %v334
    %426 = vmatpush1.msra.mxu0 %v333
    %427 = vmatprep.subr.mxu0 %v338
    %428 = vmatpush1.msra.mxu0 %v337
    %429 = vmatprep.subr.mxu0 %v342
    %430 = vmatpush1.msra.mxu0 %v341
    %431 = vmatprep.mubr.f32.mxu0 %v216
    %432 = vmatmul.mubr.f32.gmra.mrb[0].mxu0 %v215
    %v433 = vpop.f32.mrb[0].mxu0
    %v434 = vadd.f32 %v350, %v433
    %v435 = vpop.f32.mrb[0].mxu0
    %v436 = vadd.f32 %v354, %v435
    %437 = vdwg.mxu0
    %438 = vmatprep.subr.mxu0 %v220
    %439 = vmatpush1.msra.mxu0 %v219
    %440 = vmatprep.subr.mxu0 %v224
    %441 = vmatpush1.msra.mxu0 %v223
    %442 = vmatprep.subr.mxu0 %v228
    %443 = vmatpush1.msra.mxu0 %v227
    %444 = vmatprep.subr.mxu0 %v232
    %445 = vmatpush1.msra.mxu0 %v231
    %446 = vmatprep.subr.mxu0 %v236
    %447 = vmatpush1.msra.mxu0 %v235
    %448 = vmatprep.subr.mxu0 %v240
    %449 = vmatpush1.msra.mxu0 %v239
    %450 = vmatprep.subr.mxu0 %v244
    %451 = vmatpush1.msra.mxu0 %v243
    %452 = vmatprep.subr.mxu0 %v248
    %453 = vmatpush1.msra.mxu0 %v247
    %454 = vmatprep.subr.mxu0 %v252
    %455 = vmatpush1.msra.mxu0 %v251
    %456 = vmatprep.subr.mxu0 %v256
    %457 = vmatpush1.msra.mxu0 %v255
    %458 = vmatprep.subr.mxu0 %v260
    %459 = vmatpush1.msra.mxu0 %v259
    %460 = vmatprep.subr.mxu0 %v264
    %461 = vmatpush1.msra.mxu0 %v263
    %462 = vmatprep.subr.mxu0 %v268
    %463 = vmatpush1.msra.mxu0 %v267
    %464 = vmatprep.subr.mxu0 %v272
    %465 = vmatpush1.msra.mxu0 %v271
    %466 = vmatprep.subr.mxu0 %v276
    %467 = vmatpush1.msra.mxu0 %v275
    %468 = vmatprep.subr.mxu0 %v280
    %469 = vmatpush1.msra.mxu0 %v279
    %470 = vmatprep.subr.mxu0 %v284
    %471 = vmatpush1.msra.mxu0 %v283
    %472 = vmatprep.subr.mxu0 %v288
    %473 = vmatpush1.msra.mxu0 %v287
    %474 = vmatprep.subr.mxu0 %v292
    %475 = vmatpush1.msra.mxu0 %v291
    %476 = vmatprep.subr.mxu0 %v296
    %477 = vmatpush1.msra.mxu0 %v295
    %478 = vmatprep.subr.mxu0 %v300
    %479 = vmatpush1.msra.mxu0 %v299
    %480 = vmatprep.subr.mxu0 %v304
    %481 = vmatpush1.msra.mxu0 %v303
    %482 = vmatprep.subr.mxu0 %v308
    %483 = vmatpush1.msra.mxu0 %v307
    %484 = vmatprep.subr.mxu0 %v312
    %485 = vmatpush1.msra.mxu0 %v311
    %486 = vmatprep.subr.mxu0 %v316
    %487 = vmatpush1.msra.mxu0 %v315
    %488 = vmatprep.subr.mxu0 %v320
    %489 = vmatpush1.msra.mxu0 %v319
    %490 = vmatprep.subr.mxu0 %v324
    %491 = vmatpush1.msra.mxu0 %v323
    %492 = vmatprep.subr.mxu0 %v328
    %493 = vmatpush1.msra.mxu0 %v327
    %494 = vmatprep.subr.mxu0 %v332
    %495 = vmatpush1.msra.mxu0 %v331
    %496 = vmatprep.subr.mxu0 %v336
    %497 = vmatpush1.msra.mxu0 %v335
    %498 = vmatprep.subr.mxu0 %v340
    %499 = vmatpush1.msra.mxu0 %v339
    %500 = vmatprep.subr.mxu0 %v344
    %501 = vmatpush1.msra.mxu0 %v343
    %502 = vmatprep.mubr.f32.mxu0 %v216
    %503 = vmatmul.mubr.f32.gmra.mrb[0].mxu0 %v215
    %v504 = vpop.f32.mrb[0].mxu0
    %v505 = vadd.f32 %v358, %v504
    %v506 = vpop.f32.mrb[0].mxu0
    %v507 = vadd.f32 %v362, %v506
    %508 = vdwg.mxu0
    %v509 = vmax.f32 %v434, 0.0
    %v510 = vmax.f32 %v436, 0.0
    %v511 = vmax.f32 %v505, 0.0
    %v512 = vmax.f32 %v507, 0.0
    %v513 = vld [vmem:[#allocation8] sm:$0xff]
    %v514 = vld [vmem:[#allocation8 + $0x8] sm:$0xff]
    %v515 = vld [vmem:[#allocation8 + $0x10] sm:$0xff]
    %v516 = vld [vmem:[#allocation8 + $0x18] sm:$0xff]
    %v517 = vld [vmem:[#allocation8 + $0x20] sm:$0xff]
    %v518 = vld [vmem:[#allocation8 + $0x28] sm:$0xff]
    %v519 = vld [vmem:[#allocation8 + $0x30] sm:$0xff]
    %v520 = vld [vmem:[#allocation8 + $0x38] sm:$0xff]
    %v521 = vld [vmem:[#allocation8 + $0x40] sm:$0xff]
    %v522 = vld [vmem:[#allocation8 + $0x48] sm:$0xff]
    %v523 = vld [vmem:[#allocation8 + $0x50] sm:$0xff]
    %v524 = vld [vmem:[#allocation8 + $0x58] sm:$0xff]
    %v525 = vld [vmem:[#allocation8 + $0x60] sm:$0xff]
    %v526 = vld [vmem:[#allocation8 + $0x68] sm:$0xff]
    %v527 = vld [vmem:[#allocation8 + $0x70] sm:$0xff]
    %v528 = vld [vmem:[#allocation8 + $0x78] sm:$0xff]
    %v529 = vld [vmem:[#allocation8 + $0x80] sm:$0xff]
    %v530 = vld [vmem:[#allocation8 + $0x88] sm:$0xff]
    %v531 = vld [vmem:[#allocation8 + $0x90] sm:$0xff]
    %v532 = vld [vmem:[#allocation8 + $0x98] sm:$0xff]
    %v533 = vld [vmem:[#allocation8 + $0xa0] sm:$0xff]
    %v534 = vld [vmem:[#allocation8 + $0xa8] sm:$0xff]
    %v535 = vld [vmem:[#allocation8 + $0xb0] sm:$0xff]
    %v536 = vld [vmem:[#allocation8 + $0xb8] sm:$0xff]
    %v537 = vld [vmem:[#allocation8 + $0xc0] sm:$0xff]
    %v538 = vld [vmem:[#allocation8 + $0xc8] sm:$0xff]
    %v539 = vld [vmem:[#allocation8 + $0xd0] sm:$0xff]
    %v540 = vld [vmem:[#allocation8 + $0xd8] sm:$0xff]
    %v541 = vld [vmem:[#allocation8 + $0xe0] sm:$0xff]
    %v542 = vld [vmem:[#allocation8 + $0xe8] sm:$0xff]
    %v543 = vld [vmem:[#allocation8 + $0xf0] sm:$0xff]
    %v544 = vld [vmem:[#allocation8 + $0xf8] sm:$0xff]
    %v545 = vld [vmem:[#allocation8 + $0x100] sm:$0xff]
    %v546 = vld [vmem:[#allocation8 + $0x108] sm:$0xff]
    %v547 = vld [vmem:[#allocation8 + $0x110] sm:$0xff]
    %v548 = vld [vmem:[#allocation8 + $0x118] sm:$0xff]
    %v549 = vld [vmem:[#allocation8 + $0x120] sm:$0xff]
    %v550 = vld [vmem:[#allocation8 + $0x128] sm:$0xff]
    %v551 = vld [vmem:[#allocation8 + $0x130] sm:$0xff]
    %v552 = vld [vmem:[#allocation8 + $0x138] sm:$0xff]
    %v553 = vld [vmem:[#allocation8 + $0x140] sm:$0xff]
    %v554 = vld [vmem:[#allocation8 + $0x148] sm:$0xff]
    %v555 = vld [vmem:[#allocation8 + $0x150] sm:$0xff]
    %v556 = vld [vmem:[#allocation8 + $0x158] sm:$0xff]
    %v557 = vld [vmem:[#allocation8 + $0x160] sm:$0xff]
    %v558 = vld [vmem:[#allocation8 + $0x168] sm:$0xff]
    %v559 = vld [vmem:[#allocation8 + $0x170] sm:$0xff]
    %v560 = vld [vmem:[#allocation8 + $0x178] sm:$0xff]
    %v561 = vld [vmem:[#allocation8 + $0x180] sm:$0xff]
    %v562 = vld [vmem:[#allocation8 + $0x188] sm:$0xff]
    %v563 = vld [vmem:[#allocation8 + $0x190] sm:$0xff]
    %v564 = vld [vmem:[#allocation8 + $0x198] sm:$0xff]
    %v565 = vld [vmem:[#allocation8 + $0x1a0] sm:$0xff]
    %v566 = vld [vmem:[#allocation8 + $0x1a8] sm:$0xff]
    %v567 = vld [vmem:[#allocation8 + $0x1b0] sm:$0xff]
    %v568 = vld [vmem:[#allocation8 + $0x1b8] sm:$0xff]
    %v569 = vld [vmem:[#allocation8 + $0x1c0] sm:$0xff]
    %v570 = vld [vmem:[#allocation8 + $0x1c8] sm:$0xff]
    %v571 = vld [vmem:[#allocation8 + $0x1d0] sm:$0xff]
    %v572 = vld [vmem:[#allocation8 + $0x1d8] sm:$0xff]
    %v573 = vld [vmem:[#allocation8 + $0x1e0] sm:$0xff]
    %v574 = vld [vmem:[#allocation8 + $0x1e8] sm:$0xff]
    %v575 = vld [vmem:[#allocation8 + $0x1f0] sm:$0xff]
    %v576 = vld [vmem:[#allocation8 + $0x1f8] sm:$0xff]
    %v577 = vld [vmem:[#allocation8 + $0x200] sm:$0xff]
    %v578 = vld [vmem:[#allocation8 + $0x208] sm:$0xff]
    %v579 = vld [vmem:[#allocation8 + $0x210] sm:$0xff]
    %v580 = vld [vmem:[#allocation8 + $0x218] sm:$0xff]
    %v581 = vld [vmem:[#allocation8 + $0x220] sm:$0xff]
    %v582 = vld [vmem:[#allocation8 + $0x228] sm:$0xff]
    %v583 = vld [vmem:[#allocation8 + $0x230] sm:$0xff]
    %v584 = vld [vmem:[#allocation8 + $0x238] sm:$0xff]
    %v585 = vld [vmem:[#allocation8 + $0x240] sm:$0xff]
    %v586 = vld [vmem:[#allocation8 + $0x248] sm:$0xff]
    %v587 = vld [vmem:[#allocation8 + $0x250] sm:$0xff]
    %v588 = vld [vmem:[#allocation8 + $0x258] sm:$0xff]
    %v589 = vld [vmem:[#allocation8 + $0x260] sm:$0xff]
    %v590 = vld [vmem:[#allocation8 + $0x268] sm:$0xff]
    %v591 = vld [vmem:[#allocation8 + $0x270] sm:$0xff]
    %v592 = vld [vmem:[#allocation8 + $0x278] sm:$0xff]
    %v593 = vld [vmem:[#allocation8 + $0x280] sm:$0xff]
    %v594 = vld [vmem:[#allocation8 + $0x288] sm:$0xff]
    %v595 = vld [vmem:[#allocation8 + $0x290] sm:$0xff]
    %v596 = vld [vmem:[#allocation8 + $0x298] sm:$0xff]
    %v597 = vld [vmem:[#allocation8 + $0x2a0] sm:$0xff]
    %v598 = vld [vmem:[#allocation8 + $0x2a8] sm:$0xff]
    %v599 = vld [vmem:[#allocation8 + $0x2b0] sm:$0xff]
    %v600 = vld [vmem:[#allocation8 + $0x2b8] sm:$0xff]
    %v601 = vld [vmem:[#allocation8 + $0x2c0] sm:$0xff]
    %v602 = vld [vmem:[#allocation8 + $0x2c8] sm:$0xff]
    %v603 = vld [vmem:[#allocation8 + $0x2d0] sm:$0xff]
    %v604 = vld [vmem:[#allocation8 + $0x2d8] sm:$0xff]
    %v605 = vld [vmem:[#allocation8 + $0x2e0] sm:$0xff]
    %v606 = vld [vmem:[#allocation8 + $0x2e8] sm:$0xff]
    %v607 = vld [vmem:[#allocation8 + $0x2f0] sm:$0xff]
    %v608 = vld [vmem:[#allocation8 + $0x2f8] sm:$0xff]
    %v609 = vld [vmem:[#allocation8 + $0x300] sm:$0xff]
    %v610 = vld [vmem:[#allocation8 + $0x308] sm:$0xff]
    %v611 = vld [vmem:[#allocation8 + $0x310] sm:$0xff]
    %v612 = vld [vmem:[#allocation8 + $0x318] sm:$0xff]
    %v613 = vld [vmem:[#allocation8 + $0x320] sm:$0xff]
    %v614 = vld [vmem:[#allocation8 + $0x328] sm:$0xff]
    %v615 = vld [vmem:[#allocation8 + $0x330] sm:$0xff]
    %v616 = vld [vmem:[#allocation8 + $0x338] sm:$0xff]
    %v617 = vld [vmem:[#allocation8 + $0x340] sm:$0xff]
    %v618 = vld [vmem:[#allocation8 + $0x348] sm:$0xff]
    %v619 = vld [vmem:[#allocation8 + $0x350] sm:$0xff]
    %v620 = vld [vmem:[#allocation8 + $0x358] sm:$0xff]
    %v621 = vld [vmem:[#allocation8 + $0x360] sm:$0xff]
    %v622 = vld [vmem:[#allocation8 + $0x368] sm:$0xff]
    %v623 = vld [vmem:[#allocation8 + $0x370] sm:$0xff]
    %v624 = vld [vmem:[#allocation8 + $0x378] sm:$0xff]
    %v625 = vld [vmem:[#allocation8 + $0x380] sm:$0xff]
    %v626 = vld [vmem:[#allocation8 + $0x388] sm:$0xff]
    %v627 = vld [vmem:[#allocation8 + $0x390] sm:$0xff]
    %v628 = vld [vmem:[#allocation8 + $0x398] sm:$0xff]
    %v629 = vld [vmem:[#allocation8 + $0x3a0] sm:$0xff]
    %v630 = vld [vmem:[#allocation8 + $0x3a8] sm:$0xff]
    %v631 = vld [vmem:[#allocation8 + $0x3b0] sm:$0xff]
    %v632 = vld [vmem:[#allocation8 + $0x3b8] sm:$0xff]
    %v633 = vld [vmem:[#allocation8 + $0x3c0] sm:$0xff]
    %v634 = vld [vmem:[#allocation8 + $0x3c8] sm:$0xff]
    %v635 = vld [vmem:[#allocation8 + $0x3d0] sm:$0xff]
    %v636 = vld [vmem:[#allocation8 + $0x3d8] sm:$0xff]
    %v637 = vld [vmem:[#allocation8 + $0x3e0] sm:$0xff]
    %v638 = vld [vmem:[#allocation8 + $0x3e8] sm:$0xff]
    %v639 = vld [vmem:[#allocation8 + $0x3f0] sm:$0xff]
    %v640 = vld [vmem:[#allocation8 + $0x3f8] sm:$0xff]
    %v641 = vld [vmem:[%s6] sm:$0x3]
    %v643 = vlaneseq
    %v644 = vshrl.u32 %v643, 7
    %v645 = vsub.s32 0, %v644
    %v646 = vrot.slane %v641, %v645
    %v647 = vlaneseq
    %v648 = vshrl.u32 %v647, 7
    %v649 = vsub.s32 1, %v648
    %v650 = vrot.slane %v641, %v649
    %653 = vmatprep.subr.mxu0 %v514
    %654 = vmatpush1.msra.mxu0 %v513
    %655 = vmatprep.subr.mxu0 %v516
    %656 = vmatpush1.msra.mxu0 %v515
    %657 = vmatprep.subr.mxu0 %v518
    %658 = vmatpush1.msra.mxu0 %v517
    %659 = vmatprep.subr.mxu0 %v520
    %660 = vmatpush1.msra.mxu0 %v519
    %661 = vmatprep.subr.mxu0 %v522
    %662 = vmatpush1.msra.mxu0 %v521
    %663 = vmatprep.subr.mxu0 %v524
    %664 = vmatpush1.msra.mxu0 %v523
    %665 = vmatprep.subr.mxu0 %v526
    %666 = vmatpush1.msra.mxu0 %v525
    %667 = vmatprep.subr.mxu0 %v528
    %668 = vmatpush1.msra.mxu0 %v527
    %669 = vmatprep.subr.mxu0 %v530
    %670 = vmatpush1.msra.mxu0 %v529
    %671 = vmatprep.subr.mxu0 %v532
    %672 = vmatpush1.msra.mxu0 %v531
    %673 = vmatprep.subr.mxu0 %v534
    %674 = vmatpush1.msra.mxu0 %v533
    %675 = vmatprep.subr.mxu0 %v536
    %676 = vmatpush1.msra.mxu0 %v535
    %677 = vmatprep.subr.mxu0 %v538
    %678 = vmatpush1.msra.mxu0 %v537
    %679 = vmatprep.subr.mxu0 %v540
    %680 = vmatpush1.msra.mxu0 %v539
    %681 = vmatprep.subr.mxu0 %v542
    %682 = vmatpush1.msra.mxu0 %v541
    %683 = vmatprep.subr.mxu0 %v544
    %684 = vmatpush1.msra.mxu0 %v543
    %685 = vmatprep.subr.mxu0 %v546
    %686 = vmatpush1.msra.mxu0 %v545
    %687 = vmatprep.subr.mxu0 %v548
    %688 = vmatpush1.msra.mxu0 %v547
    %689 = vmatprep.subr.mxu0 %v550
    %690 = vmatpush1.msra.mxu0 %v549
    %691 = vmatprep.subr.mxu0 %v552
    %692 = vmatpush1.msra.mxu0 %v551
    %693 = vmatprep.subr.mxu0 %v554
    %694 = vmatpush1.msra.mxu0 %v553
    %695 = vmatprep.subr.mxu0 %v556
    %696 = vmatpush1.msra.mxu0 %v555
    %697 = vmatprep.subr.mxu0 %v558
    %698 = vmatpush1.msra.mxu0 %v557
    %699 = vmatprep.subr.mxu0 %v560
    %700 = vmatpush1.msra.mxu0 %v559
    %701 = vmatprep.subr.mxu0 %v562
    %702 = vmatpush1.msra.mxu0 %v561
    %703 = vmatprep.subr.mxu0 %v564
    %704 = vmatpush1.msra.mxu0 %v563
    %705 = vmatprep.subr.mxu0 %v566
    %706 = vmatpush1.msra.mxu0 %v565
    %707 = vmatprep.subr.mxu0 %v568
    %708 = vmatpush1.msra.mxu0 %v567
    %709 = vmatprep.subr.mxu0 %v570
    %710 = vmatpush1.msra.mxu0 %v569
    %711 = vmatprep.subr.mxu0 %v572
    %712 = vmatpush1.msra.mxu0 %v571
    %713 = vmatprep.subr.mxu0 %v574
    %714 = vmatpush1.msra.mxu0 %v573
    %715 = vmatprep.subr.mxu0 %v576
    %716 = vmatpush1.msra.mxu0 %v575
    %717 = vmatprep.mubr.f32.mxu0 %v510
    %718 = vmatmul.mubr.f32.gmra.mrb[0].mxu0 %v509
    %v719 = vpop.f32.mrb[0].mxu0
    %v720 = vadd.f32 %v646, %v719
    %v721 = vpop.f32.mrb[0].mxu0
    %v722 = vadd.f32 %v650, %v721
    %723 = vdwg.mxu0
    %724 = vmatprep.subr.mxu0 %v578
    %725 = vmatpush1.msra.mxu0 %v577
    %726 = vmatprep.subr.mxu0 %v580
    %727 = vmatpush1.msra.mxu0 %v579
    %728 = vmatprep.subr.mxu0 %v582
    %729 = vmatpush1.msra.mxu0 %v581
    %730 = vmatprep.subr.mxu0 %v584
    %731 = vmatpush1.msra.mxu0 %v583
    %732 = vmatprep.subr.mxu0 %v586
    %733 = vmatpush1.msra.mxu0 %v585
    %734 = vmatprep.subr.mxu0 %v588
    %735 = vmatpush1.msra.mxu0 %v587
    %736 = vmatprep.subr.mxu0 %v590
    %737 = vmatpush1.msra.mxu0 %v589
    %738 = vmatprep.subr.mxu0 %v592
    %739 = vmatpush1.msra.mxu0 %v591
    %740 = vmatprep.subr.mxu0 %v594
    %741 = vmatpush1.msra.mxu0 %v593
    %742 = vmatprep.subr.mxu0 %v596
    %743 = vmatpush1.msra.mxu0 %v595
    %744 = vmatprep.subr.mxu0 %v598
    %745 = vmatpush1.msra.mxu0 %v597
    %746 = vmatprep.subr.mxu0 %v600
    %747 = vmatpush1.msra.mxu0 %v599
    %748 = vmatprep.subr.mxu0 %v602
    %749 = vmatpush1.msra.mxu0 %v601
    %750 = vmatprep.subr.mxu0 %v604
    %751 = vmatpush1.msra.mxu0 %v603
    %752 = vmatprep.subr.mxu0 %v606
    %753 = vmatpush1.msra.mxu0 %v605
    %754 = vmatprep.subr.mxu0 %v608
    %755 = vmatpush1.msra.mxu0 %v607
    %756 = vmatprep.subr.mxu0 %v610
    %757 = vmatpush1.msra.mxu0 %v609
    %758 = vmatprep.subr.mxu0 %v612
    %759 = vmatpush1.msra.mxu0 %v611
    %760 = vmatprep.subr.mxu0 %v614
    %761 = vmatpush1.msra.mxu0 %v613
    %762 = vmatprep.subr.mxu0 %v616
    %763 = vmatpush1.msra.mxu0 %v615
    %764 = vmatprep.subr.mxu0 %v618
    %765 = vmatpush1.msra.mxu0 %v617
    %766 = vmatprep.subr.mxu0 %v620
    %767 = vmatpush1.msra.mxu0 %v619
    %768 = vmatprep.subr.mxu0 %v622
    %769 = vmatpush1.msra.mxu0 %v621
    %770 = vmatprep.subr.mxu0 %v624
    %771 = vmatpush1.msra.mxu0 %v623
    %772 = vmatprep.subr.mxu0 %v626
    %773 = vmatpush1.msra.mxu0 %v625
    %774 = vmatprep.subr.mxu0 %v628
    %775 = vmatpush1.msra.mxu0 %v627
    %776 = vmatprep.subr.mxu0 %v630
    %777 = vmatpush1.msra.mxu0 %v629
    %778 = vmatprep.subr.mxu0 %v632
    %779 = vmatpush1.msra.mxu0 %v631
    %780 = vmatprep.subr.mxu0 %v634
    %781 = vmatpush1.msra.mxu0 %v633
    %782 = vmatprep.subr.mxu0 %v636
    %783 = vmatpush1.msra.mxu0 %v635
    %784 = vmatprep.subr.mxu0 %v638
    %785 = vmatpush1.msra.mxu0 %v637
    %786 = vmatprep.subr.mxu0 %v640
    %787 = vmatpush1.msra.mxu0 %v639
    %788 = vmatprep.mubr.f32.mxu0 %v512
    %789 = vmatmul.mubr.f32.gmra.mrb[0].mxu0 %v511
    %v790 = vpop.f32.mrb[0].mxu0
    %v791 = vadd.f32 %v720, %v790
    %v792 = vpop.f32.mrb[0].mxu0
    %v793 = vadd.f32 %v722, %v792
    %794 = vdwg.mxu0
    %v795 = vmax.f32 %v791, 0.0
    %v796 = vmax.f32 %v793, 0.0
    %v797 = vld [vmem:[#allocation10] sm:$0xff]
    %v798 = vld [vmem:[#allocation10 + $0x8] sm:$0xff]
    %v799 = vld [vmem:[#allocation10 + $0x10] sm:$0xff]
    %v800 = vld [vmem:[#allocation10 + $0x18] sm:$0xff]
    %v801 = vld [vmem:[#allocation10 + $0x20] sm:$0xff]
    %v802 = vld [vmem:[#allocation10 + $0x28] sm:$0xff]
    %v803 = vld [vmem:[#allocation10 + $0x30] sm:$0xff]
    %v804 = vld [vmem:[#allocation10 + $0x38] sm:$0xff]
    %v805 = vld [vmem:[#allocation10 + $0x40] sm:$0xff]
    %v806 = vld [vmem:[#allocation10 + $0x48] sm:$0xff]
    %v807 = vld [vmem:[#allocation10 + $0x50] sm:$0xff]
    %v808 = vld [vmem:[#allocation10 + $0x58] sm:$0xff]
    %v809 = vld [vmem:[#allocation10 + $0x60] sm:$0xff]
    %v810 = vld [vmem:[#allocation10 + $0x68] sm:$0xff]
    %v811 = vld [vmem:[#allocation10 + $0x70] sm:$0xff]
    %v812 = vld [vmem:[#allocation10 + $0x78] sm:$0xff]
    %v813 = vld [vmem:[#allocation10 + $0x80] sm:$0xff]
    %v814 = vld [vmem:[#allocation10 + $0x88] sm:$0xff]
    %v815 = vld [vmem:[#allocation10 + $0x90] sm:$0xff]
    %v816 = vld [vmem:[#allocation10 + $0x98] sm:$0xff]
    %v817 = vld [vmem:[#allocation10 + $0xa0] sm:$0xff]
    %v818 = vld [vmem:[#allocation10 + $0xa8] sm:$0xff]
    %v819 = vld [vmem:[#allocation10 + $0xb0] sm:$0xff]
    %v820 = vld [vmem:[#allocation10 + $0xb8] sm:$0xff]
    %v821 = vld [vmem:[#allocation10 + $0xc0] sm:$0xff]
    %v822 = vld [vmem:[#allocation10 + $0xc8] sm:$0xff]
    %v823 = vld [vmem:[#allocation10 + $0xd0] sm:$0xff]
    %v824 = vld [vmem:[#allocation10 + $0xd8] sm:$0xff]
    %v825 = vld [vmem:[#allocation10 + $0xe0] sm:$0xff]
    %v826 = vld [vmem:[#allocation10 + $0xe8] sm:$0xff]
    %v827 = vld [vmem:[#allocation10 + $0xf0] sm:$0xff]
    %v828 = vld [vmem:[#allocation10 + $0xf8] sm:$0xff]
    %v829 = vld [vmem:[#allocation10 + $0x100] sm:$0xff]
    %v830 = vld [vmem:[#allocation10 + $0x108] sm:$0xff]
    %v831 = vld [vmem:[#allocation10 + $0x110] sm:$0xff]
    %v832 = vld [vmem:[#allocation10 + $0x118] sm:$0xff]
    %v833 = vld [vmem:[#allocation10 + $0x120] sm:$0xff]
    %v834 = vld [vmem:[#allocation10 + $0x128] sm:$0xff]
    %v835 = vld [vmem:[#allocation10 + $0x130] sm:$0xff]
    %v836 = vld [vmem:[#allocation10 + $0x138] sm:$0xff]
    %v837 = vld [vmem:[#allocation10 + $0x140] sm:$0xff]
    %v838 = vld [vmem:[#allocation10 + $0x148] sm:$0xff]
    %v839 = vld [vmem:[#allocation10 + $0x150] sm:$0xff]
    %v840 = vld [vmem:[#allocation10 + $0x158] sm:$0xff]
    %v841 = vld [vmem:[#allocation10 + $0x160] sm:$0xff]
    %v842 = vld [vmem:[#allocation10 + $0x168] sm:$0xff]
    %v843 = vld [vmem:[#allocation10 + $0x170] sm:$0xff]
    %v844 = vld [vmem:[#allocation10 + $0x178] sm:$0xff]
    %v845 = vld [vmem:[#allocation10 + $0x180] sm:$0xff]
    %v846 = vld [vmem:[#allocation10 + $0x188] sm:$0xff]
    %v847 = vld [vmem:[#allocation10 + $0x190] sm:$0xff]
    %v848 = vld [vmem:[#allocation10 + $0x198] sm:$0xff]
    %v849 = vld [vmem:[#allocation10 + $0x1a0] sm:$0xff]
    %v850 = vld [vmem:[#allocation10 + $0x1a8] sm:$0xff]
    %v851 = vld [vmem:[#allocation10 + $0x1b0] sm:$0xff]
    %v852 = vld [vmem:[#allocation10 + $0x1b8] sm:$0xff]
    %v853 = vld [vmem:[#allocation10 + $0x1c0] sm:$0xff]
    %v854 = vld [vmem:[#allocation10 + $0x1c8] sm:$0xff]
    %v855 = vld [vmem:[#allocation10 + $0x1d0] sm:$0xff]
    %v856 = vld [vmem:[#allocation10 + $0x1d8] sm:$0xff]
    %v857 = vld [vmem:[#allocation10 + $0x1e0] sm:$0xff]
    %v858 = vld [vmem:[#allocation10 + $0x1e8] sm:$0xff]
    %v859 = vld [vmem:[#allocation10 + $0x1f0] sm:$0xff]
    %v860 = vld [vmem:[#allocation10 + $0x1f8] sm:$0xff]
    %v861 = vld [vmem:[%s8] sm:$0x3]
    %v863 = vlaneseq
    %v864 = vshrl.u32 %v863, 7
    %v865 = vsub.s32 0, %v864
    %v866 = vrot.slane %v861, %v865
    %v867 = vlaneseq
    %v868 = vshrl.u32 %v867, 7
    %v869 = vsub.s32 1, %v868
    %v870 = vrot.slane %v861, %v869
    %873 = vmatprep.subr.mxu0 %v798
    %874 = vmatpush1.msra.mxu0 %v797
    %875 = vmatprep.subr.mxu0 %v800
    %876 = vmatpush1.msra.mxu0 %v799
    %877 = vmatprep.subr.mxu0 %v802
    %878 = vmatpush1.msra.mxu0 %v801
    %879 = vmatprep.subr.mxu0 %v804
    %880 = vmatpush1.msra.mxu0 %v803
    %881 = vmatprep.subr.mxu0 %v806
    %882 = vmatpush1.msra.mxu0 %v805
    %883 = vmatprep.subr.mxu0 %v808
    %884 = vmatpush1.msra.mxu0 %v807
    %885 = vmatprep.subr.mxu0 %v810
    %886 = vmatpush1.msra.mxu0 %v809
    %887 = vmatprep.subr.mxu0 %v812
    %888 = vmatpush1.msra.mxu0 %v811
    %889 = vmatprep.subr.mxu0 %v814
    %890 = vmatpush1.msra.mxu0 %v813
    %891 = vmatprep.subr.mxu0 %v816
    %892 = vmatpush1.msra.mxu0 %v815
    %893 = vmatprep.subr.mxu0 %v818
    %894 = vmatpush1.msra.mxu0 %v817
    %895 = vmatprep.subr.mxu0 %v820
    %896 = vmatpush1.msra.mxu0 %v819
    %897 = vmatprep.subr.mxu0 %v822
    %898 = vmatpush1.msra.mxu0 %v821
    %899 = vmatprep.subr.mxu0 %v824
    %900 = vmatpush1.msra.mxu0 %v823
    %901 = vmatprep.subr.mxu0 %v826
    %902 = vmatpush1.msra.mxu0 %v825
    %903 = vmatprep.subr.mxu0 %v828
    %904 = vmatpush1.msra.mxu0 %v827
    %905 = vmatprep.subr.mxu0 %v830
    %906 = vmatpush1.msra.mxu0 %v829
    %907 = vmatprep.subr.mxu0 %v832
    %908 = vmatpush1.msra.mxu0 %v831
    %909 = vmatprep.subr.mxu0 %v834
    %910 = vmatpush1.msra.mxu0 %v833
    %911 = vmatprep.subr.mxu0 %v836
    %912 = vmatpush1.msra.mxu0 %v835
    %913 = vmatprep.subr.mxu0 %v838
    %914 = vmatpush1.msra.mxu0 %v837
    %915 = vmatprep.subr.mxu0 %v840
    %916 = vmatpush1.msra.mxu0 %v839
    %917 = vmatprep.subr.mxu0 %v842
    %918 = vmatpush1.msra.mxu0 %v841
    %919 = vmatprep.subr.mxu0 %v844
    %920 = vmatpush1.msra.mxu0 %v843
    %921 = vmatprep.subr.mxu0 %v846
    %922 = vmatpush1.msra.mxu0 %v845
    %923 = vmatprep.subr.mxu0 %v848
    %924 = vmatpush1.msra.mxu0 %v847
    %925 = vmatprep.subr.mxu0 %v850
    %926 = vmatpush1.msra.mxu0 %v849
    %927 = vmatprep.subr.mxu0 %v852
    %928 = vmatpush1.msra.mxu0 %v851
    %929 = vmatprep.subr.mxu0 %v854
    %930 = vmatpush1.msra.mxu0 %v853
    %931 = vmatprep.subr.mxu0 %v856
    %932 = vmatpush1.msra.mxu0 %v855
    %933 = vmatprep.subr.mxu0 %v858
    %934 = vmatpush1.msra.mxu0 %v857
    %935 = vmatprep.subr.mxu0 %v860
    %936 = vmatpush1.msra.mxu0 %v859
    %937 = vmatprep.mubr.f32.mxu0 %v796
    %938 = vmatmul.mubr.f32.gmra.mrb[0].mxu0 %v795
    %v939 = vpop.f32.mrb[0].mxu0
    %v940 = vadd.f32 %v866, %v939
    %v941 = vpop.f32.mrb[0].mxu0
    %v942 = vadd.f32 %v870, %v941
    %943 = vdwg.mxu0
    %v944 = vmax.f32 %v940, 0.0
    %v945 = vmax.f32 %v942, 0.0
    %v946 = vld [vmem:[#allocation11] sm:$0xff]
    %v947 = vld [vmem:[#allocation11 + $0x8] sm:$0xff]
    %v948 = vld [vmem:[#allocation11 + $0x10] sm:$0xff]
    %v949 = vld [vmem:[#allocation11 + $0x18] sm:$0xff]
    %v950 = vld [vmem:[#allocation11 + $0x20] sm:$0xff]
    %v951 = vld [vmem:[#allocation11 + $0x28] sm:$0xff]
    %v952 = vld [vmem:[#allocation11 + $0x30] sm:$0xff]
    %v953 = vld [vmem:[#allocation11 + $0x38] sm:$0xff]
    %v954 = vld [vmem:[#allocation11 + $0x40] sm:$0xff]
    %v955 = vld [vmem:[#allocation11 + $0x48] sm:$0xff]
    %v956 = vld [vmem:[#allocation11 + $0x50] sm:$0xff]
    %v957 = vld [vmem:[#allocation11 + $0x58] sm:$0xff]
    %v958 = vld [vmem:[#allocation11 + $0x60] sm:$0xff]
    %v959 = vld [vmem:[#allocation11 + $0x68] sm:$0xff]
    %v960 = vld [vmem:[#allocation11 + $0x70] sm:$0xff]
    %v961 = vld [vmem:[#allocation11 + $0x78] sm:$0xff]
    %v962 = vld [vmem:[#allocation11 + $0x80] sm:$0xff]
    %v963 = vld [vmem:[#allocation11 + $0x88] sm:$0xff]
    %v964 = vld [vmem:[#allocation11 + $0x90] sm:$0xff]
    %v965 = vld [vmem:[#allocation11 + $0x98] sm:$0xff]
    %v966 = vld [vmem:[#allocation11 + $0xa0] sm:$0xff]
    %v967 = vld [vmem:[#allocation11 + $0xa8] sm:$0xff]
    %v968 = vld [vmem:[#allocation11 + $0xb0] sm:$0xff]
    %v969 = vld [vmem:[#allocation11 + $0xb8] sm:$0xff]
    %v970 = vld [vmem:[#allocation11 + $0xc0] sm:$0xff]
    %v971 = vld [vmem:[#allocation11 + $0xc8] sm:$0xff]
    %v972 = vld [vmem:[#allocation11 + $0xd0] sm:$0xff]
    %v973 = vld [vmem:[#allocation11 + $0xd8] sm:$0xff]
    %v974 = vld [vmem:[#allocation11 + $0xe0] sm:$0xff]
    %v975 = vld [vmem:[#allocation11 + $0xe8] sm:$0xff]
    %v976 = vld [vmem:[#allocation11 + $0xf0] sm:$0xff]
    %v977 = vld [vmem:[#allocation11 + $0xf8] sm:$0xff]
    %v978 = vld [vmem:[#allocation11 + $0x100] sm:$0xff]
    %v979 = vld [vmem:[#allocation11 + $0x108] sm:$0xff]
    %v980 = vld [vmem:[#allocation11 + $0x110] sm:$0xff]
    %v981 = vld [vmem:[#allocation11 + $0x118] sm:$0xff]
    %v982 = vld [vmem:[#allocation11 + $0x120] sm:$0xff]
    %v983 = vld [vmem:[#allocation11 + $0x128] sm:$0xff]
    %v984 = vld [vmem:[#allocation11 + $0x130] sm:$0xff]
    %v985 = vld [vmem:[#allocation11 + $0x138] sm:$0xff]
    %v986 = vld [vmem:[#allocation11 + $0x140] sm:$0xff]
    %v987 = vld [vmem:[#allocation11 + $0x148] sm:$0xff]
    %v988 = vld [vmem:[#allocation11 + $0x150] sm:$0xff]
    %v989 = vld [vmem:[#allocation11 + $0x158] sm:$0xff]
    %v990 = vld [vmem:[#allocation11 + $0x160] sm:$0xff]
    %v991 = vld [vmem:[#allocation11 + $0x168] sm:$0xff]
    %v992 = vld [vmem:[#allocation11 + $0x170] sm:$0xff]
    %v993 = vld [vmem:[#allocation11 + $0x178] sm:$0xff]
    %v994 = vld [vmem:[#allocation11 + $0x180] sm:$0xff]
    %v995 = vld [vmem:[#allocation11 + $0x188] sm:$0xff]
    %v996 = vld [vmem:[#allocation11 + $0x190] sm:$0xff]
    %v997 = vld [vmem:[#allocation11 + $0x198] sm:$0xff]
    %v998 = vld [vmem:[#allocation11 + $0x1a0] sm:$0xff]
    %v999 = vld [vmem:[#allocation11 + $0x1a8] sm:$0xff]
    %v1000 = vld [vmem:[#allocation11 + $0x1b0] sm:$0xff]
    %v1001 = vld [vmem:[#allocation11 + $0x1b8] sm:$0xff]
    %v1002 = vld [vmem:[#allocation11 + $0x1c0] sm:$0xff]
    %v1003 = vld [vmem:[#allocation11 + $0x1c8] sm:$0xff]
    %v1004 = vld [vmem:[#allocation11 + $0x1d0] sm:$0xff]
    %v1005 = vld [vmem:[#allocation11 + $0x1d8] sm:$0xff]
    %v1006 = vld [vmem:[#allocation11 + $0x1e0] sm:$0xff]
    %v1007 = vld [vmem:[#allocation11 + $0x1e8] sm:$0xff]
    %v1008 = vld [vmem:[#allocation11 + $0x1f0] sm:$0xff]
    %v1009 = vld [vmem:[#allocation11 + $0x1f8] sm:$0xff]
    %v1010 = vld [vmem:[%s10] sm:$0x3]
    %v1012 = vlaneseq
    %v1013 = vshrl.u32 %v1012, 7
    %v1014 = vsub.s32 0, %v1013
    %v1015 = vrot.slane %v1010, %v1014
    %v1016 = vlaneseq
    %v1017 = vshrl.u32 %v1016, 7
    %v1018 = vsub.s32 1, %v1017
    %v1019 = vrot.slane %v1010, %v1018
    %1022 = vmatprep.subr.mxu0 %v947
    %1023 = vmatpush1.msra.mxu0 %v946
    %1024 = vmatprep.subr.mxu0 %v949
    %1025 = vmatpush1.msra.mxu0 %v948
    %1026 = vmatprep.subr.mxu0 %v951
    %1027 = vmatpush1.msra.mxu0 %v950
    %1028 = vmatprep.subr.mxu0 %v953
    %1029 = vmatpush1.msra.mxu0 %v952
    %1030 = vmatprep.subr.mxu0 %v955
    %1031 = vmatpush1.msra.mxu0 %v954
    %1032 = vmatprep.subr.mxu0 %v957
    %1033 = vmatpush1.msra.mxu0 %v956
    %1034 = vmatprep.subr.mxu0 %v959
    %1035 = vmatpush1.msra.mxu0 %v958
    %1036 = vmatprep.subr.mxu0 %v961
    %1037 = vmatpush1.msra.mxu0 %v960
    %1038 = vmatprep.subr.mxu0 %v963
    %1039 = vmatpush1.msra.mxu0 %v962
    %1040 = vmatprep.subr.mxu0 %v965
    %1041 = vmatpush1.msra.mxu0 %v964
    %1042 = vmatprep.subr.mxu0 %v967
    %1043 = vmatpush1.msra.mxu0 %v966
    %1044 = vmatprep.subr.mxu0 %v969
    %1045 = vmatpush1.msra.mxu0 %v968
    %1046 = vmatprep.subr.mxu0 %v971
    %1047 = vmatpush1.msra.mxu0 %v970
    %1048 = vmatprep.subr.mxu0 %v973
    %1049 = vmatpush1.msra.mxu0 %v972
    %1050 = vmatprep.subr.mxu0 %v975
    %1051 = vmatpush1.msra.mxu0 %v974
    %1052 = vmatprep.subr.mxu0 %v977
    %1053 = vmatpush1.msra.mxu0 %v976
    %1054 = vmatprep.subr.mxu0 %v979
    %1055 = vmatpush1.msra.mxu0 %v978
    %1056 = vmatprep.subr.mxu0 %v981
    %1057 = vmatpush1.msra.mxu0 %v980
    %1058 = vmatprep.subr.mxu0 %v983
    %1059 = vmatpush1.msra.mxu0 %v982
    %1060 = vmatprep.subr.mxu0 %v985
    %1061 = vmatpush1.msra.mxu0 %v984
    %1062 = vmatprep.subr.mxu0 %v987
    %1063 = vmatpush1.msra.mxu0 %v986
    %1064 = vmatprep.subr.mxu0 %v989
    %1065 = vmatpush1.msra.mxu0 %v988
    %1066 = vmatprep.subr.mxu0 %v991
    %1067 = vmatpush1.msra.mxu0 %v990
    %1068 = vmatprep.subr.mxu0 %v993
    %1069 = vmatpush1.msra.mxu0 %v992
    %1070 = vmatprep.subr.mxu0 %v995
    %1071 = vmatpush1.msra.mxu0 %v994
    %1072 = vmatprep.subr.mxu0 %v997
    %1073 = vmatpush1.msra.mxu0 %v996
    %1074 = vmatprep.subr.mxu0 %v999
    %1075 = vmatpush1.msra.mxu0 %v998
    %1076 = vmatprep.subr.mxu0 %v1001
    %1077 = vmatpush1.msra.mxu0 %v1000
    %1078 = vmatprep.subr.mxu0 %v1003
    %1079 = vmatpush1.msra.mxu0 %v1002
    %1080 = vmatprep.subr.mxu0 %v1005
    %1081 = vmatpush1.msra.mxu0 %v1004
    %1082 = vmatprep.subr.mxu0 %v1007
    %1083 = vmatpush1.msra.mxu0 %v1006
    %1084 = vmatprep.subr.mxu0 %v1009
    %1085 = vmatpush1.msra.mxu0 %v1008
    %1086 = vmatprep.mubr.f32.mxu0 %v945
    %1087 = vmatmul.mubr.f32.gmra.mrb[0].mxu0 %v944
    %v1088 = vpop.f32.mrb[0].mxu0
    %v1089 = vadd.f32 %v1015, %v1088
    %v1090 = vpop.f32.mrb[0].mxu0
    %v1091 = vadd.f32 %v1019, %v1090
    %1092 = vdwg.mxu0
    %1093 = vst [vmem:[#allocation13] sm:$0xff] %v1089
    %v1094 = vtanh.pop %v1091
    %v1095 = vmul.f32 %v1094, 3.5
    %v1096 = vadd.f32 %v1095, -1.5
    %1097 = vst [vmem:[#allocation13 + $0x8] sm:$0xff] %v1096
    // Predicated region
    $region70: #{tpu_custom_call.1} parent=1 // pred_check
      _
    $region71: #{tpu_custom_call.1} parent=1 // pred_check_branch
      %1099 = sbr.rel (0) target = $region73
    $region72: #{tpu_custom_call.1} parent=1 // pred_region
      %s1101 = ssub.s32 256, 256
      %1102 = vsyncadd [#allocation4], %s1101
      %s1104 = sshll.u32 [#allocation13], 4
      %s1105 = int_to_ptr.vmem [resolvable:$true] %s1104
      %1107 = dma.vmem_to_hbm [thread:$0]  %s1105, 256, %s11, [#allocation4]
    $region73: #{tpu_custom_call.1} parent=1 // pred_fallthru
      _
    // Predicated region
    $region74: #{tpu_custom_call.1} parent=1 // pred_check
      _
    $region75: #{tpu_custom_call.1} parent=1 // pred_check_branch
      %1109 = sbr.rel (0) target = $region77
    $region76: #{tpu_custom_call.1} parent=1 // pred_region
      %1110 = dma.done [#allocation4], 256
    $region77: #{tpu_custom_call.1} parent=1 // pred_fallthru
      _
    %1111 = vsyncpa [#allocation3], 1
    %1112 = vsyncpa [#allocation6], 1
    %1113 = vsyncpa [#allocation9], 1
    %1114 = vsyncpa [#allocation12], 1
    %1115 = vsyncpa [#allocation4], 1

</llo_original>
